<compile_context>
chip_gen: v6e
topology: v6e:2x2x1
jax: 0.10.0
libtpu: 0.0.40
codegen_flags: <defaults>
</compile_context>

<pallas_src>
import functools

import numpy as np
import jax
import jax.numpy as jnp
from jax import lax
from jax.experimental import pallas as pl
from jax.experimental.pallas import tpu as pltpu


# ----------------------------------------------------------------------------
# In-kernel helpers (traced Python; all loop bounds are tiny and static)
# ----------------------------------------------------------------------------
def _fill_padded(pad_ref, y2d, B, H):
    """Zero ONLY the two y-halo rows (halo-only memset) and write the interior."""
    L = pad_ref.shape[2]
    zrow = jnp.zeros((B, 1, L), jnp.float32)
    pad_ref[:, pl.ds(0, 1), :] = zrow
    pad_ref[:, pl.ds(H + 1, 1), :] = zrow
    pad_ref[:, pl.ds(1, H), :] = y2d.reshape(B, H, L)


def _conv3x3_relu(src_ref, wb_ref, b_ref, B, H):
    """3x3 SAME conv + ReLU on the lane-dense (row=(b,y), lane=x*Cin+ci) layout.

    wb_ref[ky] is an offline-built banded matrix (W_in*Cin, W_out*Cout): the kx
    taps, input channels and x zero-padding are K-concatenated into it, so the
    conv is 3 full-width row-tap matmuls accumulated into a tiny register acc.
    """
    Lin = src_ref.shape[2]
    Lout = wb_ref.shape[2]
    M = B * H
    acc = jnp.zeros((M, Lout), jnp.float32)
    for ky in range(3):
        slab = src_ref[:, pl.ds(ky, H), :].reshape(M, Lin)       # aligned row slab
        acc = acc + jnp.dot(slab, wb_ref[ky], preferred_element_type=jnp.float32)
    return jnp.maximum(acc + b_ref[...], 0.0)                    # (M, Lout)


def _shift_left_lanes(x, c):
    """out[:, i] = x[:, i + c] for i < L - c, else 0 (aligns x+1 blocks under x)."""
    pad = jnp.zeros((x.shape[0], c), x.dtype)
    return jnp.concatenate([x[:, c:], pad], axis=-1)


def _row_pair_max(tmp_ref, y2d, half_rows):
    """Max of adjacent (b,y) rows: one dense store + two stride-2 row reads."""
    tmp_ref[...] = y2d
    ev = tmp_ref[pl.ds(0, half_rows, 2), :]
    od = tmp_ref[pl.ds(1, half_rows, 2), :]
    return jnp.maximum(ev, od)


# ----------------------------------------------------------------------------
# Fused forward kernel
# ----------------------------------------------------------------------------
def _cnn_b_kernel(xp_ref,
                  wb11_ref, bb11_ref, wb12_ref, bb12_ref,
                  wb21_ref, bb21_ref, wb22_ref, bb22_ref,
                  w1_ref, b1_ref, w2_ref, b2_ref, w3_ref, b3_ref,
                  out_ref,
                  pad12, pad21, pad22, ptmp1, ptmp2,
                  *, B, S, F1, F2):
    H1, H2, Hq = S, S // 2, S // 4

    # ---- stage 1: conv1_1 -> conv1_2 -> 2x2 max-pool ------------------------
    y = _conv3x3_relu(xp_ref, wb11_ref, bb11_ref, B, H1)          # (B*H1, S*F1)
    _fill_padded(pad12, y, B, H1)
    y = _conv3x3_relu(pad12, wb12_ref, bb12_ref, B, H1)           # (B*H1, S*F1)
    rows = _row_pair_max(ptmp1, y, B * H2)                        # (B*H2, S*F1)
    # column-pair max; pooled value sits in the EVEN x blocks (odd blocks are
    # ignored downstream via zero weight rows -> no lane compaction needed).
    p1 = jnp.maximum(rows, _shift_left_lanes(rows, F1))           # (B*H2, S*F1)

    # ---- stage 2: conv2_1 -> conv2_2 -> 2x2 max-pool -------------------------
    # wb21 was built with x-stride 2, i.e. the pool's even-block selection is
    # folded into the weights and the uncompacted rows feed the conv directly.
    _fill_padded(pad21, p1, B, H2)
    y = _conv3x3_relu(pad21, wb21_ref, bb21_ref, B, H2)           # (B*H2, S2*F2)
    _fill_padded(pad22, y, B, H2)
    y = _conv3x3_relu(pad22, wb22_ref, bb22_ref, B, H2)           # (B*H2, S2*F2)
    rows = _row_pair_max(ptmp2, y, B * Hq)                        # (B*Hq, S2*F2)
    p2 = jnp.maximum(rows, _shift_left_lanes(rows, F2))           # (B*Hq, S2*F2)

    # ---- FC head: ONE fc1 dot (K = Hq * S2 * F2); the torch NCHW flatten and
    #      the pool-2 even-block selection are absorbed into w1 offline --------
    L2 = p2.shape[1]
    p2 = p2.reshape(B, Hq, L2)
    flat = jnp.concatenate([p2[:, r, :] for r in range(Hq)], axis=-1)   # (B, Hq*L2)
    h = jnp.maximum(
        jnp.dot(flat, w1_ref[...], preferred_element_type=jnp.float32) + b1_ref[...],
        0.0)
    # dropout(p=0.5) is identity at inference
    # TODO(synk): training-mode dropout (pltpu.prng_* mask) not implemented.
    h = jnp.maximum(
        jnp.dot(h, w2_ref[...], preferred_element_type=jnp.float32) + b2_ref[...],
        0.0)
    out_ref[...] = (jnp.dot(h, w3_ref[...], preferred_element_type=jnp.float32)
                    + b3_ref[...])


# ----------------------------------------------------------------------------
# Offline parameter packing (once, outside the hot path)
# ----------------------------------------------------------------------------
def _band_conv_weights(w_oihw, w_in_blocks, w_out, x_stride):
    """Build the 3 banded matrices of a 3x3 SAME conv for the lane-dense layout.

    wb[ky][xin*Cin + ci, xo*Cout + co] = w[co, ci, ky, kx] with
    xin = x_stride * (xo + kx - 1); everything else is zero.  This encodes the
    x zero-padding and, for x_stride=2, the preceding 2x2-pool's even-block
    selection.
    """
    w = np.asarray(w_oihw, np.float32)                  # torch OIHW (Cout,Cin,3,3)
    cout, cin = w.shape[0], w.shape[1]
    wb = np.zeros((3, w_in_blocks * cin, w_out * cout), np.float32)
    for ky in range(3):
        for kx in range(3):
            tap = w[:, :, ky, kx].T                     # (Cin, Cout)
            for xo in range(w_out):
                xi = xo + kx - 1
                if 0 <= xi < w_out:
                    xin = x_stride * xi
                    wb[ky, xin * cin:(xin + 1) * cin,
                       xo * cout:(xo + 1) * cout] = tap
    return jnp.asarray(wb)


def _tile_bias(b, w_out):
    return jnp.asarray(np.tile(np.asarray(b, np.float32), w_out).reshape(1, -1))


def _row(b):
    return jnp.asarray(np.asarray(b, np.float32).reshape(1, -1))


def _pack_fc1(fc1_w, f2, hq, wq, x_stride=2):
    """fc1 weights reindexed to the kernel's (yh, uncompacted x block, c) flatten.

    torch flat index = c*(hq*wq) + yh*wq + xh (NCHW).  The kernel's flat vector
    is the concat over yh of uncompacted slabs of x_stride*wq lane blocks whose
    EVEN blocks hold pooled pixels; odd blocks map to zero rows here.
    """
    w = np.asarray(fc1_w, np.float32)                   # (FC1, f2*hq*wq)
    fc1 = w.shape[0]
    w = w.reshape(fc1, f2, hq, wq)
    wblk = x_stride * wq
    out = np.zeros((hq * wblk * f2, fc1), np.float32)
    for yh in range(hq):
        for xh in range(wq):
            base = yh * wblk * f2 + (x_stride * xh) * f2
            out[base:base + f2, :] = w[:, :, yh, xh].T
    return jnp.asarray(out)


def pack_params(p, image_size):
    """Re-pack PyTorch-layout params (conv OIHW, linear (out,in)) for the kernel."""
    S = image_size
    S2, Sq = S // 2, S // 4
    F2 = p["conv2_1_w"].shape[0]
    return (
        _band_conv_weights(p["conv1_1_w"], S, S, 1),   _tile_bias(p["conv1_1_b"], S),
        _band_conv_weights(p["conv1_2_w"], S, S, 1),   _tile_bias(p["conv1_2_b"], S),
        _band_conv_weights(p["conv2_1_w"], S, S2, 2),  _tile_bias(p["conv2_1_b"], S2),
        _band_conv_weights(p["conv2_2_w"], S2, S2, 1), _tile_bias(p["conv2_2_b"], S2),
        _pack_fc1(p["fc1_w"], F2, Sq, Sq),             _row(p["fc1_b"]),
        jnp.asarray(np.asarray(p["fc2_w"], np.float32).T), _row(p["fc2_b"]),
        jnp.asarray(np.asarray(p["fc3_w"], np.float32).T), _row(p["fc3_b"]),
    )


# ----------------------------------------------------------------------------
# Fused forward call
# ----------------------------------------------------------------------------
@jax.jit
def cnn_b_forward(x_nchw, packed):
    B, Cin, S, _ = x_nchw.shape
    S2 = S // 2
    F1 = packed[1].shape[1] // S          # bb11 is (1, S*F1)
    F2 = packed[5].shape[1] // S2         # bb21 is (1, S2*F2)
    FC3 = packed[13].shape[1]
    L1 = S * F1                           # stage-1 lane width (dense)
    L2 = S2 * F2                          # stage-2 lane width (dense)

    # NCHW -> lane-dense rows (b, y) x lanes (x*Cin + ci), pre-padded in y.
    x = jnp.transpose(x_nchw, (0, 2, 3, 1)).astype(jnp.float32).reshape(B, S, S * Cin)
    xp = jnp.pad(x, ((0, 0), (1, 1), (0, 0)))

    kernel = functools.partial(_cnn_b_kernel, B=B, S=S, F1=F1, F2=F2)
    vmem = pl.BlockSpec(memory_space=pltpu.MemorySpace.VMEM)

    return pl.pallas_call(
        kernel,
        out_shape=jax.ShapeDtypeStruct((B, FC3), jnp.float32),
        in_specs=[vmem] * 15,
        out_specs=vmem,
        scratch_shapes=[
            pltpu.VMEM((B, S + 2, L1), jnp.float32),    # pad12 : conv1_2 input
            pltpu.VMEM((B, S2 + 2, L1), jnp.float32),   # pad21 : conv2_1 input (uncompacted pool1)
            pltpu.VMEM((B, S2 + 2, L2), jnp.float32),   # pad22 : conv2_2 input
            pltpu.VMEM((B * S, L1), jnp.float32),       # ptmp1 : pool1 row-pair max
            pltpu.VMEM((B * S2, L2), jnp.float32),      # ptmp2 : pool2 row-pair max
        ],
    )(xp, *packed)


# ----------------------------------------------------------------------------
# Deterministic parameter init (PyTorch layouts: conv OIHW, linear (out,in))
# ----------------------------------------------------------------------------
def init_params(key, input_channels=3, filters1=8, filters2=16, image_size=16,
                fc1_out=32, fc2_out=32, fc3_out=8):
    def uinit(k, shape, fan_in):
        bound = 1.0 / jnp.sqrt(jnp.float32(fan_in))
        return jax.random.uniform(k, shape, jnp.float32, -bound, bound)

    keys = jax.random.split(key, 14)
    flat = filters2 * (image_size // 4) ** 2
    p = {}
    p["conv1_1_w"] = uinit(keys[0], (filters1, input_channels, 3, 3), input_channels * 9)
    p["conv1_1_b"] = uinit(keys[1], (filters1,), input_channels * 9)
    p["conv1_2_w"] = uinit(keys[2], (filters1, filters1, 3, 3), filters1 * 9)
    p["conv1_2_b"] = uinit(keys[3], (filters1,), filters1 * 9)
    p["conv2_1_w"] = uinit(keys[4], (filters2, filters1, 3, 3), filters1 * 9)
    p["conv2_1_b"] = uinit(keys[5], (filters2,), filters1 * 9)
    p["conv2_2_w"] = uinit(keys[6], (filters2, filters2, 3, 3), filters2 * 9)
    p["conv2_2_b"] = uinit(keys[7], (filters2,), filters2 * 9)
    # conv3_*/conv4_* exist in the torch __init__ but are never used in forward().
    p["fc1_w"] = uinit(keys[8], (fc1_out, flat), flat)
    p["fc1_b"] = uinit(keys[9], (fc1_out,), flat)
    p["fc2_w"] = uinit(keys[10], (fc2_out, fc1_out), fc1_out)
    p["fc2_b"] = uinit(keys[11], (fc2_out,), fc1_out)
    p["fc3_w"] = uinit(keys[12], (fc3_out, fc2_out), fc2_out)
    p["fc3_b"] = uinit(keys[13], (fc3_out,), fc2_out)
    return p


# ----------------------------------------------------------------------------
# Pure-JAX reference (for correctness check)
# ----------------------------------------------------------------------------
def _conv_ref(x, w, b):
    y = lax.conv_general_dilated(x, w, (1, 1), ((1, 1), (1, 1)),
                                 dimension_numbers=("NCHW", "OIHW", "NCHW"))
    return jax.nn.relu(y + b[None, :, None, None])


def _pool_ref(x):
    return lax.reduce_window(x, -jnp.inf, lax.max, (1, 1, 2, 2), (1, 1, 2, 2), "VALID")


def cnn_b_reference(x, p):
    y = _conv_ref(x, p["conv1_1_w"], p["conv1_1_b"])
    y = _conv_ref(y, p["conv1_2_w"], p["conv1_2_b"])
    y = _pool_ref(y)
    y = _conv_ref(y, p["conv2_1_w"], p["conv2_1_b"])
    y = _conv_ref(y, p["conv2_2_w"], p["conv2_2_b"])
    y = _pool_ref(y)
    y = y.reshape(y.shape[0], -1)
    y = jax.nn.relu(y @ p["fc1_w"].T + p["fc1_b"])
    y = jax.nn.relu(y @ p["fc2_w"].T + p["fc2_b"])
    return y @ p["fc3_w"].T + p["fc3_b"]


if __name__ == "__main__":
    key = jax.random.PRNGKey(0)
    kx, kp = jax.random.split(key)

    # Small shapes consistent with the module: batch=2, channels=3, 16x16 image,
    # filters1=8, filters2=16, fc dims 32/32/8 -> flat_size = 16*(16//4)^2 = 256.
    B, C, S = 2, 3, 16
    x = jax.random.normal(kx, (B, C, S, S), jnp.float32)
    params = init_params(kp, input_channels=C, image_size=S)

    packed = pack_params(params, image_size=S)     # one-time param packing
    out = cnn_b_forward(x, packed)
    out = jax.block_until_ready(out)
    assert out.shape == (B, 8) and out.dtype == jnp.float32

    ref = cnn_b_reference(x, params)
    if not bool(jnp.allclose(out, ref, atol=1e-4, rtol=1e-4)):
        raise AssertionError("Pallas kernel output does not match JAX reference")

    print("KERNEL_OK")
</pallas_src>

<mosaic_0001>
module attributes {stable_mosaic.version = 11 : i64} {
  func.func @_cnn_b_kernel(%arg0: memref<2x18x48xf32, #tpu.memory_space<vmem>>, %arg1: memref<3x48x128xf32, #tpu.memory_space<vmem>>, %arg2: memref<1x128xf32, #tpu.memory_space<vmem>>, %arg3: memref<3x128x128xf32, #tpu.memory_space<vmem>>, %arg4: memref<1x128xf32, #tpu.memory_space<vmem>>, %arg5: memref<3x128x128xf32, #tpu.memory_space<vmem>>, %arg6: memref<1x128xf32, #tpu.memory_space<vmem>>, %arg7: memref<3x128x128xf32, #tpu.memory_space<vmem>>, %arg8: memref<1x128xf32, #tpu.memory_space<vmem>>, %arg9: memref<512x32xf32, #tpu.memory_space<vmem>>, %arg10: memref<1x32xf32, #tpu.memory_space<vmem>>, %arg11: memref<32x32xf32, #tpu.memory_space<vmem>>, %arg12: memref<1x32xf32, #tpu.memory_space<vmem>>, %arg13: memref<32x8xf32, #tpu.memory_space<vmem>>, %arg14: memref<1x8xf32, #tpu.memory_space<vmem>>, %arg15: memref<2x8xf32, #tpu.memory_space<vmem>>, %arg16: memref<2x18x128xf32, #tpu.memory_space<vmem>>, %arg17: memref<2x10x128xf32, #tpu.memory_space<vmem>>, %arg18: memref<2x10x128xf32, #tpu.memory_space<vmem>>, %arg19: memref<32x128xf32, #tpu.memory_space<vmem>>, %arg20: memref<16x128xf32, #tpu.memory_space<vmem>>) attributes {dimension_semantics = [], scalar_prefetch = 0 : i64, scratch_operands = 5 : i64, tpu.core_type = #tpu.core_type<tc>} {
    %cst = arith.constant 0.000000e+00 : f32
    %0 = vector.broadcast %cst : f32 to vector<32x128xf32>
    %c0 = arith.constant 0 : index
    %c0_0 = arith.constant 0 : index
    %c0_1 = arith.constant 0 : index
    %1 = vector.load %arg0[%c0, %c0_0, %c0_1] : memref<2x18x48xf32, #tpu.memory_space<vmem>>, vector<2x16x48xf32>
    %2 = vector.shape_cast %1 : vector<2x16x48xf32> to vector<32x48xf32>
    %c0_2 = arith.constant 0 : index
    %c0_3 = arith.constant 0 : index
    %c0_4 = arith.constant 0 : index
    %3 = vector.load %arg1[%c0_2, %c0_3, %c0_4] : memref<3x48x128xf32, #tpu.memory_space<vmem>>, vector<1x48x128xf32>
    %4 = vector.shape_cast %3 : vector<1x48x128xf32> to vector<48x128xf32>
    %cst_5 = arith.constant dense<0.000000e+00> : vector<32x128xf32>
    %5 = tpu.matmul %2, %4, %cst_5 {dimension_numbers = #tpu.dot_dimension_numbers<[1], [0], [0], [1], [0, 0, 1, 1], [], []>} : vector<32x48xf32>, vector<48x128xf32>, vector<32x128xf32> -> vector<32x128xf32>
    %6 = arith.addf %0, %5 : vector<32x128xf32>
    %c0_6 = arith.constant 0 : index
    %c1 = arith.constant 1 : index
    %c0_7 = arith.constant 0 : index
    %7 = vector.load %arg0[%c0_6, %c1, %c0_7] : memref<2x18x48xf32, #tpu.memory_space<vmem>>, vector<2x16x48xf32>
    %8 = vector.shape_cast %7 : vector<2x16x48xf32> to vector<32x48xf32>
    %c1_8 = arith.constant 1 : index
    %c0_9 = arith.constant 0 : index
    %c0_10 = arith.constant 0 : index
    %9 = vector.load %arg1[%c1_8, %c0_9, %c0_10] : memref<3x48x128xf32, #tpu.memory_space<vmem>>, vector<1x48x128xf32>
    %10 = vector.shape_cast %9 : vector<1x48x128xf32> to vector<48x128xf32>
    %cst_11 = arith.constant dense<0.000000e+00> : vector<32x128xf32>
    %11 = tpu.matmul %8, %10, %cst_11 {dimension_numbers = #tpu.dot_dimension_numbers<[1], [0], [0], [1], [0, 0, 1, 1], [], []>} : vector<32x48xf32>, vector<48x128xf32>, vector<32x128xf32> -> vector<32x128xf32>
    %12 = arith.addf %6, %11 : vector<32x128xf32>
    %c0_12 = arith.constant 0 : index
    %c2 = arith.constant 2 : index
    %c0_13 = arith.constant 0 : index
    %13 = vector.load %arg0[%c0_12, %c2, %c0_13] : memref<2x18x48xf32, #tpu.memory_space<vmem>>, vector<2x16x48xf32>
    %14 = vector.shape_cast %13 : vector<2x16x48xf32> to vector<32x48xf32>
    %c2_14 = arith.constant 2 : index
    %c0_15 = arith.constant 0 : index
    %c0_16 = arith.constant 0 : index
    %15 = vector.load %arg1[%c2_14, %c0_15, %c0_16] : memref<3x48x128xf32, #tpu.memory_space<vmem>>, vector<1x48x128xf32>
    %16 = vector.shape_cast %15 : vector<1x48x128xf32> to vector<48x128xf32>
    %cst_17 = arith.constant dense<0.000000e+00> : vector<32x128xf32>
    %17 = tpu.matmul %14, %16, %cst_17 {dimension_numbers = #tpu.dot_dimension_numbers<[1], [0], [0], [1], [0, 0, 1, 1], [], []>} : vector<32x48xf32>, vector<48x128xf32>, vector<32x128xf32> -> vector<32x128xf32>
    %18 = arith.addf %12, %17 : vector<32x128xf32>
    %c0_18 = arith.constant 0 : index
    %c0_19 = arith.constant 0 : index
    %19 = vector.load %arg2[%c0_18, %c0_19] : memref<1x128xf32, #tpu.memory_space<vmem>>, vector<1x128xf32>
    %20 = vector.broadcast %19 : vector<1x128xf32> to vector<32x128xf32>
    %21 = arith.addf %18, %20 : vector<32x128xf32>
    %cst_20 = arith.constant 0.000000e+00 : f32
    %22 = vector.broadcast %cst_20 : f32 to vector<32x128xf32>
    %23 = arith.maximumf %21, %22 : vector<32x128xf32>
    %cst_21 = arith.constant 0.000000e+00 : f32
    %24 = vector.broadcast %cst_21 : f32 to vector<2x1x128xf32>
    %c0_22 = arith.constant 0 : index
    %c0_23 = arith.constant 0 : index
    %c0_24 = arith.constant 0 : index
    %25 = vector.load %arg16[%c0_22, %c0_23, %c0_24] : memref<2x18x128xf32, #tpu.memory_space<vmem>>, vector<2x1x128xf32>
    tpu.vector_store %arg16[%c0_22, %c0_23, %c0_24], %24 {strides = array<i32>} : memref<2x18x128xf32, #tpu.memory_space<vmem>>, vector<2x1x128xf32>,
    %c0_25 = arith.constant 0 : index
    %c17 = arith.constant 17 : index
    %c0_26 = arith.constant 0 : index
    %26 = vector.load %arg16[%c0_25, %c17, %c0_26] : memref<2x18x128xf32, #tpu.memory_space<vmem>>, vector<2x1x128xf32>
    tpu.vector_store %arg16[%c0_25, %c17, %c0_26], %24 {strides = array<i32>} : memref<2x18x128xf32, #tpu.memory_space<vmem>>, vector<2x1x128xf32>,
    %27 = vector.shape_cast %23 : vector<32x128xf32> to vector<2x16x128xf32>
    %c0_27 = arith.constant 0 : index
    %c1_28 = arith.constant 1 : index
    %c0_29 = arith.constant 0 : index
    %28 = vector.load %arg16[%c0_27, %c1_28, %c0_29] : memref<2x18x128xf32, #tpu.memory_space<vmem>>, vector<2x16x128xf32>
    tpu.vector_store %arg16[%c0_27, %c1_28, %c0_29], %27 {strides = array<i32>} : memref<2x18x128xf32, #tpu.memory_space<vmem>>, vector<2x16x128xf32>,
    %cst_30 = arith.constant 0.000000e+00 : f32
    %29 = vector.broadcast %cst_30 : f32 to vector<32x128xf32>
    %c0_31 = arith.constant 0 : index
    %c0_32 = arith.constant 0 : index
    %c0_33 = arith.constant 0 : index
    %30 = vector.load %arg16[%c0_31, %c0_32, %c0_33] : memref<2x18x128xf32, #tpu.memory_space<vmem>>, vector<2x16x128xf32>
    %31 = vector.shape_cast %30 : vector<2x16x128xf32> to vector<32x128xf32>
    %c0_34 = arith.constant 0 : index
    %c0_35 = arith.constant 0 : index
    %c0_36 = arith.constant 0 : index
    %32 = vector.load %arg3[%c0_34, %c0_35, %c0_36] : memref<3x128x128xf32, #tpu.memory_space<vmem>>, vector<1x128x128xf32>
    %33 = vector.shape_cast %32 : vector<1x128x128xf32> to vector<128x128xf32>
    %cst_37 = arith.constant dense<0.000000e+00> : vector<32x128xf32>
    %34 = tpu.matmul %31, %33, %cst_37 {dimension_numbers = #tpu.dot_dimension_numbers<[1], [0], [0], [1], [0, 0, 1, 1], [], []>} : vector<32x128xf32>, vector<128x128xf32>, vector<32x128xf32> -> vector<32x128xf32>
    %35 = arith.addf %29, %34 : vector<32x128xf32>
    %c0_38 = arith.constant 0 : index
    %c1_39 = arith.constant 1 : index
    %c0_40 = arith.constant 0 : index
    %36 = vector.load %arg16[%c0_38, %c1_39, %c0_40] : memref<2x18x128xf32, #tpu.memory_space<vmem>>, vector<2x16x128xf32>
    %37 = vector.shape_cast %36 : vector<2x16x128xf32> to vector<32x128xf32>
    %c1_41 = arith.constant 1 : index
    %c0_42 = arith.constant 0 : index
    %c0_43 = arith.constant 0 : index
    %38 = vector.load %arg3[%c1_41, %c0_42, %c0_43] : memref<3x128x128xf32, #tpu.memory_space<vmem>>, vector<1x128x128xf32>
    %39 = vector.shape_cast %38 : vector<1x128x128xf32> to vector<128x128xf32>
    %cst_44 = arith.constant dense<0.000000e+00> : vector<32x128xf32>
    %40 = tpu.matmul %37, %39, %cst_44 {dimension_numbers = #tpu.dot_dimension_numbers<[1], [0], [0], [1], [0, 0, 1, 1], [], []>} : vector<32x128xf32>, vector<128x128xf32>, vector<32x128xf32> -> vector<32x128xf32>
    %41 = arith.addf %35, %40 : vector<32x128xf32>
    %c0_45 = arith.constant 0 : index
    %c2_46 = arith.constant 2 : index
    %c0_47 = arith.constant 0 : index
    %42 = vector.load %arg16[%c0_45, %c2_46, %c0_47] : memref<2x18x128xf32, #tpu.memory_space<vmem>>, vector<2x16x128xf32>
    %43 = vector.shape_cast %42 : vector<2x16x128xf32> to vector<32x128xf32>
    %c2_48 = arith.constant 2 : index
    %c0_49 = arith.constant 0 : index
    %c0_50 = arith.constant 0 : index
    %44 = vector.load %arg3[%c2_48, %c0_49, %c0_50] : memref<3x128x128xf32, #tpu.memory_space<vmem>>, vector<1x128x128xf32>
    %45 = vector.shape_cast %44 : vector<1x128x128xf32> to vector<128x128xf32>
    %cst_51 = arith.constant dense<0.000000e+00> : vector<32x128xf32>
    %46 = tpu.matmul %43, %45, %cst_51 {dimension_numbers = #tpu.dot_dimension_numbers<[1], [0], [0], [1], [0, 0, 1, 1], [], []>} : vector<32x128xf32>, vector<128x128xf32>, vector<32x128xf32> -> vector<32x128xf32>
    %47 = arith.addf %41, %46 : vector<32x128xf32>
    %c0_52 = arith.constant 0 : index
    %c0_53 = arith.constant 0 : index
    %48 = vector.load %arg4[%c0_52, %c0_53] : memref<1x128xf32, #tpu.memory_space<vmem>>, vector<1x128xf32>
    %49 = vector.broadcast %48 : vector<1x128xf32> to vector<32x128xf32>
    %50 = arith.addf %47, %49 : vector<32x128xf32>
    %cst_54 = arith.constant 0.000000e+00 : f32
    %51 = vector.broadcast %cst_54 : f32 to vector<32x128xf32>
    %52 = arith.maximumf %50, %51 : vector<32x128xf32>
    %c0_55 = arith.constant 0 : index
    %c0_56 = arith.constant 0 : index
    %53 = vector.load %arg19[%c0_55, %c0_56] : memref<32x128xf32, #tpu.memory_space<vmem>>, vector<32x128xf32>
    tpu.vector_store %arg19[%c0_55, %c0_56], %52 {strides = array<i32>} : memref<32x128xf32, #tpu.memory_space<vmem>>, vector<32x128xf32>,
    %c0_57 = arith.constant 0 : index
    %c0_58 = arith.constant 0 : index
    %54 = tpu.strided_load %arg19[%c0_57, %c0_58] {strides = array<i32: 2, 1>} : memref<32x128xf32, #tpu.memory_space<vmem>>, vector<16x128xf32>
    %c1_59 = arith.constant 1 : index
    %c0_60 = arith.constant 0 : index
    %55 = tpu.strided_load %arg19[%c1_59, %c0_60] {strides = array<i32: 2, 1>} : memref<32x128xf32, #tpu.memory_space<vmem>>, vector<16x128xf32>
    %56 = arith.maximumf %54, %55 : vector<16x128xf32>
    %cst_61 = arith.constant 0.000000e+00 : f32
    %57 = vector.broadcast %cst_61 : f32 to vector<16x8xf32>
    %58 = vector.extract_strided_slice %56 {offsets = [0, 8], sizes = [16, 120], strides = [1, 1]} : vector<16x128xf32> to vector<16x120xf32>
    %59 = tpu.concatenate %58, %57 in 1 : vector<16x120xf32>, vector<16x8xf32> -> vector<16x128xf32>
    %60 = arith.maximumf %56, %59 : vector<16x128xf32>
    %cst_62 = arith.constant 0.000000e+00 : f32
    %61 = vector.broadcast %cst_62 : f32 to vector<2x1x128xf32>
    %c0_63 = arith.constant 0 : index
    %c0_64 = arith.constant 0 : index
    %c0_65 = arith.constant 0 : index
    %62 = vector.load %arg17[%c0_63, %c0_64, %c0_65] : memref<2x10x128xf32, #tpu.memory_space<vmem>>, vector<2x1x128xf32>
    tpu.vector_store %arg17[%c0_63, %c0_64, %c0_65], %61 {strides = array<i32>} : memref<2x10x128xf32, #tpu.memory_space<vmem>>, vector<2x1x128xf32>,
    %c0_66 = arith.constant 0 : index
    %c9 = arith.constant 9 : index
    %c0_67 = arith.constant 0 : index
    %63 = vector.load %arg17[%c0_66, %c9, %c0_67] : memref<2x10x128xf32, #tpu.memory_space<vmem>>, vector<2x1x128xf32>
    tpu.vector_store %arg17[%c0_66, %c9, %c0_67], %61 {strides = array<i32>} : memref<2x10x128xf32, #tpu.memory_space<vmem>>, vector<2x1x128xf32>,
    %64 = vector.shape_cast %60 : vector<16x128xf32> to vector<2x8x128xf32>
    %c0_68 = arith.constant 0 : index
    %c1_69 = arith.constant 1 : index
    %c0_70 = arith.constant 0 : index
    %65 = vector.load %arg17[%c0_68, %c1_69, %c0_70] : memref<2x10x128xf32, #tpu.memory_space<vmem>>, vector<2x8x128xf32>
    tpu.vector_store %arg17[%c0_68, %c1_69, %c0_70], %64 {strides = array<i32>} : memref<2x10x128xf32, #tpu.memory_space<vmem>>, vector<2x8x128xf32>,
    %cst_71 = arith.constant 0.000000e+00 : f32
    %66 = vector.broadcast %cst_71 : f32 to vector<16x128xf32>
    %c0_72 = arith.constant 0 : index
    %c0_73 = arith.constant 0 : index
    %c0_74 = arith.constant 0 : index
    %67 = vector.load %arg17[%c0_72, %c0_73, %c0_74] : memref<2x10x128xf32, #tpu.memory_space<vmem>>, vector<2x8x128xf32>
    %68 = vector.shape_cast %67 : vector<2x8x128xf32> to vector<16x128xf32>
    %c0_75 = arith.constant 0 : index
    %c0_76 = arith.constant 0 : index
    %c0_77 = arith.constant 0 : index
    %69 = vector.load %arg5[%c0_75, %c0_76, %c0_77] : memref<3x128x128xf32, #tpu.memory_space<vmem>>, vector<1x128x128xf32>
    %70 = vector.shape_cast %69 : vector<1x128x128xf32> to vector<128x128xf32>
    %cst_78 = arith.constant dense<0.000000e+00> : vector<16x128xf32>
    %71 = tpu.matmul %68, %70, %cst_78 {dimension_numbers = #tpu.dot_dimension_numbers<[1], [0], [0], [1], [0, 0, 1, 1], [], []>} : vector<16x128xf32>, vector<128x128xf32>, vector<16x128xf32> -> vector<16x128xf32>
    %72 = arith.addf %66, %71 : vector<16x128xf32>
    %c0_79 = arith.constant 0 : index
    %c1_80 = arith.constant 1 : index
    %c0_81 = arith.constant 0 : index
    %73 = vector.load %arg17[%c0_79, %c1_80, %c0_81] : memref<2x10x128xf32, #tpu.memory_space<vmem>>, vector<2x8x128xf32>
    %74 = vector.shape_cast %73 : vector<2x8x128xf32> to vector<16x128xf32>
    %c1_82 = arith.constant 1 : index
    %c0_83 = arith.constant 0 : index
    %c0_84 = arith.constant 0 : index
    %75 = vector.load %arg5[%c1_82, %c0_83, %c0_84] : memref<3x128x128xf32, #tpu.memory_space<vmem>>, vector<1x128x128xf32>
    %76 = vector.shape_cast %75 : vector<1x128x128xf32> to vector<128x128xf32>
    %cst_85 = arith.constant dense<0.000000e+00> : vector<16x128xf32>
    %77 = tpu.matmul %74, %76, %cst_85 {dimension_numbers = #tpu.dot_dimension_numbers<[1], [0], [0], [1], [0, 0, 1, 1], [], []>} : vector<16x128xf32>, vector<128x128xf32>, vector<16x128xf32> -> vector<16x128xf32>
    %78 = arith.addf %72, %77 : vector<16x128xf32>
    %c0_86 = arith.constant 0 : index
    %c2_87 = arith.constant 2 : index
    %c0_88 = arith.constant 0 : index
    %79 = vector.load %arg17[%c0_86, %c2_87, %c0_88] : memref<2x10x128xf32, #tpu.memory_space<vmem>>, vector<2x8x128xf32>
    %80 = vector.shape_cast %79 : vector<2x8x128xf32> to vector<16x128xf32>
    %c2_89 = arith.constant 2 : index
    %c0_90 = arith.constant 0 : index
    %c0_91 = arith.constant 0 : index
    %81 = vector.load %arg5[%c2_89, %c0_90, %c0_91] : memref<3x128x128xf32, #tpu.memory_space<vmem>>, vector<1x128x128xf32>
    %82 = vector.shape_cast %81 : vector<1x128x128xf32> to vector<128x128xf32>
    %cst_92 = arith.constant dense<0.000000e+00> : vector<16x128xf32>
    %83 = tpu.matmul %80, %82, %cst_92 {dimension_numbers = #tpu.dot_dimension_numbers<[1], [0], [0], [1], [0, 0, 1, 1], [], []>} : vector<16x128xf32>, vector<128x128xf32>, vector<16x128xf32> -> vector<16x128xf32>
    %84 = arith.addf %78, %83 : vector<16x128xf32>
    %c0_93 = arith.constant 0 : index
    %c0_94 = arith.constant 0 : index
    %85 = vector.load %arg6[%c0_93, %c0_94] : memref<1x128xf32, #tpu.memory_space<vmem>>, vector<1x128xf32>
    %86 = vector.broadcast %85 : vector<1x128xf32> to vector<16x128xf32>
    %87 = arith.addf %84, %86 : vector<16x128xf32>
    %cst_95 = arith.constant 0.000000e+00 : f32
    %88 = vector.broadcast %cst_95 : f32 to vector<16x128xf32>
    %89 = arith.maximumf %87, %88 : vector<16x128xf32>
    %cst_96 = arith.constant 0.000000e+00 : f32
    %90 = vector.broadcast %cst_96 : f32 to vector<2x1x128xf32>
    %c0_97 = arith.constant 0 : index
    %c0_98 = arith.constant 0 : index
    %c0_99 = arith.constant 0 : index
    %91 = vector.load %arg18[%c0_97, %c0_98, %c0_99] : memref<2x10x128xf32, #tpu.memory_space<vmem>>, vector<2x1x128xf32>
    tpu.vector_store %arg18[%c0_97, %c0_98, %c0_99], %90 {strides = array<i32>} : memref<2x10x128xf32, #tpu.memory_space<vmem>>, vector<2x1x128xf32>,
    %c0_100 = arith.constant 0 : index
    %c9_101 = arith.constant 9 : index
    %c0_102 = arith.constant 0 : index
    %92 = vector.load %arg18[%c0_100, %c9_101, %c0_102] : memref<2x10x128xf32, #tpu.memory_space<vmem>>, vector<2x1x128xf32>
    tpu.vector_store %arg18[%c0_100, %c9_101, %c0_102], %90 {strides = array<i32>} : memref<2x10x128xf32, #tpu.memory_space<vmem>>, vector<2x1x128xf32>,
    %93 = vector.shape_cast %89 : vector<16x128xf32> to vector<2x8x128xf32>
    %c0_103 = arith.constant 0 : index
    %c1_104 = arith.constant 1 : index
    %c0_105 = arith.constant 0 : index
    %94 = vector.load %arg18[%c0_103, %c1_104, %c0_105] : memref<2x10x128xf32, #tpu.memory_space<vmem>>, vector<2x8x128xf32>
    tpu.vector_store %arg18[%c0_103, %c1_104, %c0_105], %93 {strides = array<i32>} : memref<2x10x128xf32, #tpu.memory_space<vmem>>, vector<2x8x128xf32>,
    %cst_106 = arith.constant 0.000000e+00 : f32
    %95 = vector.broadcast %cst_106 : f32 to vector<16x128xf32>
    %c0_107 = arith.constant 0 : index
    %c0_108 = arith.constant 0 : index
    %c0_109 = arith.constant 0 : index
    %96 = vector.load %arg18[%c0_107, %c0_108, %c0_109] : memref<2x10x128xf32, #tpu.memory_space<vmem>>, vector<2x8x128xf32>
    %97 = vector.shape_cast %96 : vector<2x8x128xf32> to vector<16x128xf32>
    %c0_110 = arith.constant 0 : index
    %c0_111 = arith.constant 0 : index
    %c0_112 = arith.constant 0 : index
    %98 = vector.load %arg7[%c0_110, %c0_111, %c0_112] : memref<3x128x128xf32, #tpu.memory_space<vmem>>, vector<1x128x128xf32>
    %99 = vector.shape_cast %98 : vector<1x128x128xf32> to vector<128x128xf32>
    %cst_113 = arith.constant dense<0.000000e+00> : vector<16x128xf32>
    %100 = tpu.matmul %97, %99, %cst_113 {dimension_numbers = #tpu.dot_dimension_numbers<[1], [0], [0], [1], [0, 0, 1, 1], [], []>} : vector<16x128xf32>, vector<128x128xf32>, vector<16x128xf32> -> vector<16x128xf32>
    %101 = arith.addf %95, %100 : vector<16x128xf32>
    %c0_114 = arith.constant 0 : index
    %c1_115 = arith.constant 1 : index
    %c0_116 = arith.constant 0 : index
    %102 = vector.load %arg18[%c0_114, %c1_115, %c0_116] : memref<2x10x128xf32, #tpu.memory_space<vmem>>, vector<2x8x128xf32>
    %103 = vector.shape_cast %102 : vector<2x8x128xf32> to vector<16x128xf32>
    %c1_117 = arith.constant 1 : index
    %c0_118 = arith.constant 0 : index
    %c0_119 = arith.constant 0 : index
    %104 = vector.load %arg7[%c1_117, %c0_118, %c0_119] : memref<3x128x128xf32, #tpu.memory_space<vmem>>, vector<1x128x128xf32>
    %105 = vector.shape_cast %104 : vector<1x128x128xf32> to vector<128x128xf32>
    %cst_120 = arith.constant dense<0.000000e+00> : vector<16x128xf32>
    %106 = tpu.matmul %103, %105, %cst_120 {dimension_numbers = #tpu.dot_dimension_numbers<[1], [0], [0], [1], [0, 0, 1, 1], [], []>} : vector<16x128xf32>, vector<128x128xf32>, vector<16x128xf32> -> vector<16x128xf32>
    %107 = arith.addf %101, %106 : vector<16x128xf32>
    %c0_121 = arith.constant 0 : index
    %c2_122 = arith.constant 2 : index
    %c0_123 = arith.constant 0 : index
    %108 = vector.load %arg18[%c0_121, %c2_122, %c0_123] : memref<2x10x128xf32, #tpu.memory_space<vmem>>, vector<2x8x128xf32>
    %109 = vector.shape_cast %108 : vector<2x8x128xf32> to vector<16x128xf32>
    %c2_124 = arith.constant 2 : index
    %c0_125 = arith.constant 0 : index
    %c0_126 = arith.constant 0 : index
    %110 = vector.load %arg7[%c2_124, %c0_125, %c0_126] : memref<3x128x128xf32, #tpu.memory_space<vmem>>, vector<1x128x128xf32>
    %111 = vector.shape_cast %110 : vector<1x128x128xf32> to vector<128x128xf32>
    %cst_127 = arith.constant dense<0.000000e+00> : vector<16x128xf32>
    %112 = tpu.matmul %109, %111, %cst_127 {dimension_numbers = #tpu.dot_dimension_numbers<[1], [0], [0], [1], [0, 0, 1, 1], [], []>} : vector<16x128xf32>, vector<128x128xf32>, vector<16x128xf32> -> vector<16x128xf32>
    %113 = arith.addf %107, %112 : vector<16x128xf32>
    %c0_128 = arith.constant 0 : index
    %c0_129 = arith.constant 0 : index
    %114 = vector.load %arg8[%c0_128, %c0_129] : memref<1x128xf32, #tpu.memory_space<vmem>>, vector<1x128xf32>
    %115 = vector.broadcast %114 : vector<1x128xf32> to vector<16x128xf32>
    %116 = arith.addf %113, %115 : vector<16x128xf32>
    %cst_130 = arith.constant 0.000000e+00 : f32
    %117 = vector.broadcast %cst_130 : f32 to vector<16x128xf32>
    %118 = arith.maximumf %116, %117 : vector<16x128xf32>
    %c0_131 = arith.constant 0 : index
    %c0_132 = arith.constant 0 : index
    %119 = vector.load %arg20[%c0_131, %c0_132] : memref<16x128xf32, #tpu.memory_space<vmem>>, vector<16x128xf32>
    tpu.vector_store %arg20[%c0_131, %c0_132], %118 {strides = array<i32>} : memref<16x128xf32, #tpu.memory_space<vmem>>, vector<16x128xf32>,
    %c0_133 = arith.constant 0 : index
    %c0_134 = arith.constant 0 : index
    %120 = tpu.strided_load %arg20[%c0_133, %c0_134] {strides = array<i32: 2, 1>} : memref<16x128xf32, #tpu.memory_space<vmem>>, vector<8x128xf32>
    %c1_135 = arith.constant 1 : index
    %c0_136 = arith.constant 0 : index
    %121 = tpu.strided_load %arg20[%c1_135, %c0_136] {strides = array<i32: 2, 1>} : memref<16x128xf32, #tpu.memory_space<vmem>>, vector<8x128xf32>
    %122 = arith.maximumf %120, %121 : vector<8x128xf32>
    %cst_137 = arith.constant 0.000000e+00 : f32
    %123 = vector.broadcast %cst_137 : f32 to vector<8x16xf32>
    %124 = vector.extract_strided_slice %122 {offsets = [0, 16], sizes = [8, 112], strides = [1, 1]} : vector<8x128xf32> to vector<8x112xf32>
    %125 = tpu.concatenate %124, %123 in 1 : vector<8x112xf32>, vector<8x16xf32> -> vector<8x128xf32>
    %126 = arith.maximumf %122, %125 : vector<8x128xf32>
    %127 = vector.shape_cast %126 : vector<8x128xf32> to vector<2x4x128xf32>
    %128 = vector.extract_strided_slice %127 {offsets = [0, 0, 0], sizes = [2, 1, 128], strides = [1, 1, 1]} : vector<2x4x128xf32> to vector<2x1x128xf32>
    %129 = vector.shape_cast %128 : vector<2x1x128xf32> to vector<2x128xf32>
    %130 = vector.extract_strided_slice %127 {offsets = [0, 1, 0], sizes = [2, 1, 128], strides = [1, 1, 1]} : vector<2x4x128xf32> to vector<2x1x128xf32>
    %131 = vector.shape_cast %130 : vector<2x1x128xf32> to vector<2x128xf32>
    %132 = vector.extract_strided_slice %127 {offsets = [0, 2, 0], sizes = [2, 1, 128], strides = [1, 1, 1]} : vector<2x4x128xf32> to vector<2x1x128xf32>
    %133 = vector.shape_cast %132 : vector<2x1x128xf32> to vector<2x128xf32>
    %134 = vector.extract_strided_slice %127 {offsets = [0, 3, 0], sizes = [2, 1, 128], strides = [1, 1, 1]} : vector<2x4x128xf32> to vector<2x1x128xf32>
    %135 = vector.shape_cast %134 : vector<2x1x128xf32> to vector<2x128xf32>
    %136 = tpu.concatenate %129, %131, %133, %135 in 1 : vector<2x128xf32>, vector<2x128xf32>, vector<2x128xf32>, vector<2x128xf32> -> vector<2x512xf32>
    %c0_138 = arith.constant 0 : index
    %c0_139 = arith.constant 0 : index
    %137 = vector.load %arg9[%c0_138, %c0_139] : memref<512x32xf32, #tpu.memory_space<vmem>>, vector<512x32xf32>
    %cst_140 = arith.constant dense<0.000000e+00> : vector<2x32xf32>
    %138 = tpu.matmul %136, %137, %cst_140 {dimension_numbers = #tpu.dot_dimension_numbers<[1], [0], [0], [1], [0, 0, 1, 1], [], []>} : vector<2x512xf32>, vector<512x32xf32>, vector<2x32xf32> -> vector<2x32xf32>
    %c0_141 = arith.constant 0 : index
    %c0_142 = arith.constant 0 : index
    %139 = vector.load %arg10[%c0_141, %c0_142] : memref<1x32xf32, #tpu.memory_space<vmem>>, vector<1x32xf32>
    %140 = vector.broadcast %139 : vector<1x32xf32> to vector<2x32xf32>
    %141 = arith.addf %138, %140 : vector<2x32xf32>
    %cst_143 = arith.constant 0.000000e+00 : f32
    %142 = vector.broadcast %cst_143 : f32 to vector<2x32xf32>
    %143 = arith.maximumf %141, %142 : vector<2x32xf32>
    %c0_144 = arith.constant 0 : index
    %c0_145 = arith.constant 0 : index
    %144 = vector.load %arg11[%c0_144, %c0_145] : memref<32x32xf32, #tpu.memory_space<vmem>>, vector<32x32xf32>
    %cst_146 = arith.constant dense<0.000000e+00> : vector<2x32xf32>
    %145 = tpu.matmul %143, %144, %cst_146 {dimension_numbers = #tpu.dot_dimension_numbers<[1], [0], [0], [1], [0, 0, 1, 1], [], []>} : vector<2x32xf32>, vector<32x32xf32>, vector<2x32xf32> -> vector<2x32xf32>
    %c0_147 = arith.constant 0 : index
    %c0_148 = arith.constant 0 : index
    %146 = vector.load %arg12[%c0_147, %c0_148] : memref<1x32xf32, #tpu.memory_space<vmem>>, vector<1x32xf32>
    %147 = vector.broadcast %146 : vector<1x32xf32> to vector<2x32xf32>
    %148 = arith.addf %145, %147 : vector<2x32xf32>
    %cst_149 = arith.constant 0.000000e+00 : f32
    %149 = vector.broadcast %cst_149 : f32 to vector<2x32xf32>
    %150 = arith.maximumf %148, %149 : vector<2x32xf32>
    %c0_150 = arith.constant 0 : index
    %c0_151 = arith.constant 0 : index
    %151 = vector.load %arg13[%c0_150, %c0_151] : memref<32x8xf32, #tpu.memory_space<vmem>>, vector<32x8xf32>
    %cst_152 = arith.constant dense<0.000000e+00> : vector<2x8xf32>
    %152 = tpu.matmul %150, %151, %cst_152 {dimension_numbers = #tpu.dot_dimension_numbers<[1], [0], [0], [1], [0, 0, 1, 1], [], []>} : vector<2x32xf32>, vector<32x8xf32>, vector<2x8xf32> -> vector<2x8xf32>
    %c0_153 = arith.constant 0 : index
    %c0_154 = arith.constant 0 : index
    %153 = vector.load %arg14[%c0_153, %c0_154] : memref<1x8xf32, #tpu.memory_space<vmem>>, vector<1x8xf32>
    %154 = vector.broadcast %153 : vector<1x8xf32> to vector<2x8xf32>
    %155 = arith.addf %152, %154 : vector<2x8xf32>
    %c0_155 = arith.constant 0 : index
    %c0_156 = arith.constant 0 : index
    %156 = vector.load %arg15[%c0_155, %c0_156] : memref<2x8xf32, #tpu.memory_space<vmem>>, vector<2x8xf32>
    tpu.vector_store %arg15[%c0_155, %c0_156], %155 {strides = array<i32>} : memref<2x8xf32, #tpu.memory_space<vmem>>, vector<2x8xf32>,
    return
  }
}

</mosaic_0001>

<llo_original>
// kernel: cnn_b_forward.1
$region0: #{cnn_b_forward.1}
  #allocation0 [shape = 'u32[]', space=smem, size = 0x4, offset = 0x4, fixed_abs, tag = 'smem constant byte address 0x4 - core index']
  #allocation1 [shape = 'u32[144,128]{1,0:T(1,128)}', space=vmem, size = 0x12000, scoped, tag = 'internal scratch']
  #allocation2 [shape = 'f32[2,18,128]{2,1,0:T(8,128)}', space=vmem, size = 0x6000, scoped, tag = 'scratch operand']
  #allocation3 [shape = 'f32[2,10,128]{2,1,0:T(8,128)}', space=vmem, size = 0x4000, scoped, tag = 'scratch operand']
  #allocation4 [shape = 'f32[2,10,128]{2,1,0:T(8,128)}', space=vmem, size = 0x4000, scoped, tag = 'scratch operand']
  #allocation5 [shape = 'f32[32,128]{1,0:T(8,128)}', space=vmem, size = 0x4000, scoped, tag = 'scratch operand']
  #allocation6 [shape = 'f32[16,128]{1,0:T(8,128)}', space=vmem, size = 0x2000, scoped, tag = 'scratch operand']
  %s0 = inlined_call_operand.vmem [shape: f32[2,18,48], index: 0, kind: input, shape index: {}]
  %s1 = inlined_call_operand.vmem [shape: f32[3,48,128], index: 1, kind: input, shape index: {}]
  %s2 = inlined_call_operand.vmem [shape: f32[1,128], index: 2, kind: input, shape index: {}]
  %s3 = inlined_call_operand.vmem [shape: f32[3,128,128], index: 3, kind: input, shape index: {}]
  %s4 = inlined_call_operand.vmem [shape: f32[1,128], index: 4, kind: input, shape index: {}]
  %s5 = inlined_call_operand.vmem [shape: f32[3,128,128], index: 5, kind: input, shape index: {}]
  %s6 = inlined_call_operand.vmem [shape: f32[1,128], index: 6, kind: input, shape index: {}]
  %s7 = inlined_call_operand.hbm [shape: f32[3,128,128], index: 7, kind: input, shape index: {}]
  %s8 = inlined_call_operand.vmem [shape: f32[1,128], index: 8, kind: input, shape index: {}]
  %s9 = inlined_call_operand.vmem [shape: f32[512,32], index: 9, kind: input, shape index: {}]
  %s10 = inlined_call_operand.vmem [shape: f32[1,32], index: 10, kind: input, shape index: {}]
  %s11 = inlined_call_operand.vmem [shape: f32[32,32], index: 11, kind: input, shape index: {}]
  %s12 = inlined_call_operand.vmem [shape: f32[1,32], index: 12, kind: input, shape index: {}]
  %s13 = inlined_call_operand.vmem [shape: f32[32,8], index: 13, kind: input, shape index: {}]
  %s14 = inlined_call_operand.vmem [shape: f32[1,8], index: 14, kind: input, shape index: {}]
  %s15 = inlined_call_operand.hbm [shape: f32[2,8], index: 15, kind: output, shape index: {}]
  %s16 = sld [smem:[#allocation0]]
  $region74: #{cnn_b_forward.1} parent=0
    _
  %s18 = ssub.s32 1, %s16
  %s19 = scalar_select 0, %s18, %s16
  $region1: #{cnn_b_forward.1} parent=0
    #allocation7 [shape = 'u8[196608]{0}', space=vmem, size = 0x30000, scoped, tag = 'input window, operand 7, single buffered']
    #allocation8 [shape = 's32[1]{0}', space=sflag, size = 0x4, scoped, tag = 'scoped memory for cnn_b_forward.1']
    #allocation9 [shape = 's32[1]{0}', space=sflag, size = 0x4, scoped, tag = 'scoped memory for cnn_b_forward.1']
    #allocation10 [shape = 'u8[1024]{0}', space=vmem, size = 0x400, scoped, tag = 'output window, operand 0, single buffered']
    %20 = vsyncpa [#allocation8], 0
    %21 = vsyncpa [#allocation9], 0
    // Predicated region
    $region2: #{cnn_b_forward.1} parent=1 // pred_check
      _
    $region3: #{cnn_b_forward.1} parent=1 // pred_check_branch
      %23 = sbr.rel (0) target = $region5
    $region4: #{cnn_b_forward.1} parent=1 // pred_region
      _
    $region5: #{cnn_b_forward.1} parent=1 // pred_fallthru
      _
    // Predicated region
    $region6: #{cnn_b_forward.1} parent=1 // pred_check
      _
    $region7: #{cnn_b_forward.1} parent=1 // pred_check_branch
      %25 = sbr.rel (0) target = $region9
    $region8: #{cnn_b_forward.1} parent=1 // pred_region
      _
    $region9: #{cnn_b_forward.1} parent=1 // pred_fallthru
      _
    // Predicated region
    $region10: #{cnn_b_forward.1} parent=1 // pred_check
      _
    $region11: #{cnn_b_forward.1} parent=1 // pred_check_branch
      %27 = sbr.rel (0) target = $region13
    $region12: #{cnn_b_forward.1} parent=1 // pred_region
      _
    $region13: #{cnn_b_forward.1} parent=1 // pred_fallthru
      _
    // Predicated region
    $region14: #{cnn_b_forward.1} parent=1 // pred_check
      _
    $region15: #{cnn_b_forward.1} parent=1 // pred_check_branch
      %29 = sbr.rel (0) target = $region17
    $region16: #{cnn_b_forward.1} parent=1 // pred_region
      _
    $region17: #{cnn_b_forward.1} parent=1 // pred_fallthru
      _
    // Predicated region
    $region18: #{cnn_b_forward.1} parent=1 // pred_check
      _
    $region19: #{cnn_b_forward.1} parent=1 // pred_check_branch
      %31 = sbr.rel (0) target = $region21
    $region20: #{cnn_b_forward.1} parent=1 // pred_region
      _
    $region21: #{cnn_b_forward.1} parent=1 // pred_fallthru
      _
    // Predicated region
    $region22: #{cnn_b_forward.1} parent=1 // pred_check
      _
    $region23: #{cnn_b_forward.1} parent=1 // pred_check_branch
      %33 = sbr.rel (0) target = $region25
    $region24: #{cnn_b_forward.1} parent=1 // pred_region
      _
    $region25: #{cnn_b_forward.1} parent=1 // pred_fallthru
      _
    // Predicated region
    $region26: #{cnn_b_forward.1} parent=1 // pred_check
      _
    $region27: #{cnn_b_forward.1} parent=1 // pred_check_branch
      %35 = sbr.rel (0) target = $region29
    $region28: #{cnn_b_forward.1} parent=1 // pred_region
      _
    $region29: #{cnn_b_forward.1} parent=1 // pred_fallthru
      _
    // Predicated region
    $region30: #{cnn_b_forward.1} parent=1 // pred_check
      _
    $region31: #{cnn_b_forward.1} parent=1 // pred_check_branch
      %37 = sbr.rel (0) target = $region33
    $region32: #{cnn_b_forward.1} parent=1 // pred_region
      %s39 = ssub.s32 6144, 6144
      %40 = vsyncadd [#allocation8], %s39
      %s41 = sshll.u32 [#allocation7], 4
      %s42 = int_to_ptr.vmem [resolvable:$true] %s41
      %47 = dma.hbm_to_vmem [thread:$0]  %s7, 6144, %s42, [#allocation8], 128, 128, 8
    $region33: #{cnn_b_forward.1} parent=1 // pred_fallthru
      _
    // Predicated region
    $region34: #{cnn_b_forward.1} parent=1 // pred_check
      _
    $region35: #{cnn_b_forward.1} parent=1 // pred_check_branch
      %49 = sbr.rel (0) target = $region37
    $region36: #{cnn_b_forward.1} parent=1 // pred_region
      _
    $region37: #{cnn_b_forward.1} parent=1 // pred_fallthru
      _
    // Predicated region
    $region38: #{cnn_b_forward.1} parent=1 // pred_check
      _
    $region39: #{cnn_b_forward.1} parent=1 // pred_check_branch
      %51 = sbr.rel (0) target = $region41
    $region40: #{cnn_b_forward.1} parent=1 // pred_region
      _
    $region41: #{cnn_b_forward.1} parent=1 // pred_fallthru
      _
    // Predicated region
    $region42: #{cnn_b_forward.1} parent=1 // pred_check
      _
    $region43: #{cnn_b_forward.1} parent=1 // pred_check_branch
      %53 = sbr.rel (0) target = $region45
    $region44: #{cnn_b_forward.1} parent=1 // pred_region
      _
    $region45: #{cnn_b_forward.1} parent=1 // pred_fallthru
      _
    // Predicated region
    $region46: #{cnn_b_forward.1} parent=1 // pred_check
      _
    $region47: #{cnn_b_forward.1} parent=1 // pred_check_branch
      %55 = sbr.rel (0) target = $region49
    $region48: #{cnn_b_forward.1} parent=1 // pred_region
      _
    $region49: #{cnn_b_forward.1} parent=1 // pred_fallthru
      _
    // Predicated region
    $region50: #{cnn_b_forward.1} parent=1 // pred_check
      _
    $region51: #{cnn_b_forward.1} parent=1 // pred_check_branch
      %57 = sbr.rel (0) target = $region53
    $region52: #{cnn_b_forward.1} parent=1 // pred_region
      _
    $region53: #{cnn_b_forward.1} parent=1 // pred_fallthru
      _
    // Predicated region
    $region54: #{cnn_b_forward.1} parent=1 // pred_check
      _
    $region55: #{cnn_b_forward.1} parent=1 // pred_check_branch
      %59 = sbr.rel (0) target = $region57
    $region56: #{cnn_b_forward.1} parent=1 // pred_region
      _
    $region57: #{cnn_b_forward.1} parent=1 // pred_fallthru
      _
    // Predicated region
    $region58: #{cnn_b_forward.1} parent=1 // pred_check
      _
    $region59: #{cnn_b_forward.1} parent=1 // pred_check_branch
      %61 = sbr.rel (0) target = $region61
    $region60: #{cnn_b_forward.1} parent=1 // pred_region
      _
    $region61: #{cnn_b_forward.1} parent=1 // pred_fallthru
      _
    // Predicated region
    $region62: #{cnn_b_forward.1} parent=1 // pred_check
      _
    $region63: #{cnn_b_forward.1} parent=1 // pred_check_branch
      %63 = sbr.rel (0) target = $region65
    $region64: #{cnn_b_forward.1} parent=1 // pred_region
      %64 = dma.done [#allocation8], 6144
    $region65: #{cnn_b_forward.1} parent=1 // pred_fallthru
      _
    %v65 = vld [vmem:[%s0] sm:$0xff]
    %v66 = vld [vmem:[%s0 + $0x8] sm:$0xff]
    %v67 = vld [vmem:[%s0 + $0x18] sm:$0xff]
    %v68 = vld [vmem:[%s0 + $0x20] sm:$0xff]
    %v69 = vld [vmem:[%s1] sm:$0xff]
    %v70 = vld [vmem:[%s1 + $0x8] sm:$0xff]
    %v71 = vld [vmem:[%s1 + $0x10] sm:$0xff]
    %v72 = vld [vmem:[%s1 + $0x18] sm:$0xff]
    %v73 = vld [vmem:[%s1 + $0x20] sm:$0xff]
    %v74 = vld [vmem:[%s1 + $0x28] sm:$0xff]
    %v75 = vld [vmem:[%s0 + $0x1] sm:$0xff]
    %v76 = vld [vmem:[%s0 + $0x9] sm:$0xff]
    %v77 = vld [vmem:[%s0 + $0x19] sm:$0xff]
    %v78 = vld [vmem:[%s0 + $0x21] sm:$0xff]
    %s79 = scalar_lea.vmem %s1, 48
    %v80 = vld [vmem:[%s79] sm:$0xff]
    %v81 = vld [vmem:[%s79 + $0x8] sm:$0xff]
    %v82 = vld [vmem:[%s79 + $0x10] sm:$0xff]
    %v83 = vld [vmem:[%s79 + $0x18] sm:$0xff]
    %v84 = vld [vmem:[%s79 + $0x20] sm:$0xff]
    %v85 = vld [vmem:[%s79 + $0x28] sm:$0xff]
    %vm86 = vcmask 392192
    %v88 = vsel %vm86, %v75, 0
    %v91 = vsel %vm86, %v76, 0
    %v94 = vsel %vm86, %v77, 0
    %v97 = vsel %vm86, %v78, 0
    %99 = vmatprep.subr.mxu0 0.0
    %100 = vmatpush1.msra.mxu0 0.0
    %101 = vmatprep.subr.mxu0 0.0
    %102 = vmatpush1.msra.mxu0 0.0
    %103 = vmatprep.subr.mxu0 0.0
    %104 = vmatpush1.msra.mxu0 0.0
    %105 = vmatprep.subr.mxu0 0.0
    %106 = vmatpush1.msra.mxu0 0.0
    %107 = vmatprep.subr.mxu0 0.0
    %108 = vmatpush1.msra.mxu0 0.0
    %109 = vmatprep.subr.mxu0 0.0
    %110 = vmatpush1.msra.mxu0 0.0
    %111 = vmatprep.subr.mxu0 0.0
    %112 = vmatpush1.msra.mxu0 0.0
    %113 = vmatprep.subr.mxu0 0.0
    %114 = vmatpush1.msra.mxu0 0.0
    %115 = vmatprep.subr.mxu0 0.0
    %116 = vmatpush1.msra.mxu0 0.0
    %117 = vmatprep.subr.mxu0 0.0
    %118 = vmatpush1.msra.mxu0 0.0
    %119 = vmatprep.subr.mxu0 0.0
    %120 = vmatpush1.msra.mxu0 %v85
    %121 = vmatprep.subr.mxu0 0.0
    %122 = vmatpush1.msra.mxu0 %v84
    %123 = vmatprep.subr.mxu0 0.0
    %124 = vmatpush1.msra.mxu0 %v83
    %125 = vmatprep.subr.mxu0 0.0
    %126 = vmatpush1.msra.mxu0 %v82
    %127 = vmatprep.subr.mxu0 0.0
    %128 = vmatpush1.msra.mxu0 %v81
    %129 = vmatprep.subr.mxu0 0.0
    %130 = vmatpush1.msra.mxu0 %v80
    %131 = vmatprep.subr.mxu0 0.0
    %132 = vmatpush2.msra.mxu0 0.0
    %133 = vmatprep.subr.mxu0 0.0
    %134 = vmatpush2.msra.mxu0 0.0
    %135 = vmatprep.subr.mxu0 0.0
    %136 = vmatpush2.msra.mxu0 0.0
    %137 = vmatprep.subr.mxu0 0.0
    %138 = vmatpush2.msra.mxu0 0.0
    %139 = vmatprep.subr.mxu0 0.0
    %140 = vmatpush2.msra.mxu0 0.0
    %141 = vmatprep.subr.mxu0 0.0
    %142 = vmatpush2.msra.mxu0 0.0
    %143 = vmatprep.subr.mxu0 0.0
    %144 = vmatpush2.msra.mxu0 0.0
    %145 = vmatprep.subr.mxu0 0.0
    %146 = vmatpush2.msra.mxu0 0.0
    %147 = vmatprep.subr.mxu0 0.0
    %148 = vmatpush2.msra.mxu0 0.0
    %149 = vmatprep.subr.mxu0 0.0
    %150 = vmatpush2.msra.mxu0 0.0
    %151 = vmatprep.subr.mxu0 0.0
    %152 = vmatpush2.msra.mxu0 0.0
    %153 = vmatprep.subr.mxu0 0.0
    %154 = vmatpush2.msra.mxu0 0.0
    %155 = vmatprep.subr.mxu0 0.0
    %156 = vmatpush2.msra.mxu0 0.0
    %157 = vmatprep.subr.mxu0 0.0
    %158 = vmatpush2.msra.mxu0 0.0
    %159 = vmatprep.subr.mxu0 0.0
    %160 = vmatpush2.msra.mxu0 0.0
    %161 = vmatprep.subr.mxu0 0.0
    %162 = vmatpush2.msra.mxu0 0.0
    %163 = vmatprep.mubr.f32.mxu0 0.0
    %164 = vmatmul.mubr.f32.gmra.mxu0 %v88
    %v165 = vpop.f32.mrf.mxu0
    %v166 = vadd.f32 0.0, %v165
    %v167 = vpop.f32.mrf.mxu0
    %168 = vmatprep.mubr.f32.mxu0 0.0
    %169 = vmatmul.mubr.f32.gmra.mxu0 %v91
    %v170 = vpop.f32.mrf.mxu0
    %v171 = vadd.f32 0.0, %v170
    %v172 = vpop.f32.mrf.mxu0
    %173 = vmatprep.mubr.f32.mxu0 0.0
    %174 = vmatmul.mubr.f32.gmra.mxu0 %v94
    %v175 = vpop.f32.mrf.mxu0
    %v176 = vadd.f32 0.0, %v175
    %v177 = vpop.f32.mrf.mxu0
    %178 = vmatprep.mubr.f32.mxu0 0.0
    %179 = vmatmul.mubr.f32.gmra.mxu0 %v97
    %v180 = vpop.f32.mrf.mxu0
    %v181 = vadd.f32 0.0, %v180
    %v182 = vpop.f32.mrf.mxu0
    %183 = vdwg.mxu0
    %v185 = vsel %vm86, %v65, 0
    %v188 = vsel %vm86, %v66, 0
    %v191 = vsel %vm86, %v67, 0
    %v194 = vsel %vm86, %v68, 0
    %196 = vmatprep.subr.mxu0 0.0
    %197 = vmatpush1.msra.mxu0 0.0
    %198 = vmatprep.subr.mxu0 0.0
    %199 = vmatpush1.msra.mxu0 0.0
    %200 = vmatprep.subr.mxu0 0.0
    %201 = vmatpush1.msra.mxu0 0.0
    %202 = vmatprep.subr.mxu0 0.0
    %203 = vmatpush1.msra.mxu0 0.0
    %204 = vmatprep.subr.mxu0 0.0
    %205 = vmatpush1.msra.mxu0 0.0
    %206 = vmatprep.subr.mxu0 0.0
    %207 = vmatpush1.msra.mxu0 0.0
    %208 = vmatprep.subr.mxu0 0.0
    %209 = vmatpush1.msra.mxu0 0.0
    %210 = vmatprep.subr.mxu0 0.0
    %211 = vmatpush1.msra.mxu0 0.0
    %212 = vmatprep.subr.mxu0 0.0
    %213 = vmatpush1.msra.mxu0 0.0
    %214 = vmatprep.subr.mxu0 0.0
    %215 = vmatpush1.msra.mxu0 0.0
    %216 = vmatprep.subr.mxu0 0.0
    %217 = vmatpush1.msra.mxu0 %v74
    %218 = vmatprep.subr.mxu0 0.0
    %219 = vmatpush1.msra.mxu0 %v73
    %220 = vmatprep.subr.mxu0 0.0
    %221 = vmatpush1.msra.mxu0 %v72
    %222 = vmatprep.subr.mxu0 0.0
    %223 = vmatpush1.msra.mxu0 %v71
    %224 = vmatprep.subr.mxu0 0.0
    %225 = vmatpush1.msra.mxu0 %v70
    %226 = vmatprep.subr.mxu0 0.0
    %227 = vmatpush1.msra.mxu0 %v69
    %228 = vmatprep.subr.mxu0 0.0
    %229 = vmatpush2.msra.mxu0 0.0
    %230 = vmatprep.subr.mxu0 0.0
    %231 = vmatpush2.msra.mxu0 0.0
    %232 = vmatprep.subr.mxu0 0.0
    %233 = vmatpush2.msra.mxu0 0.0
    %234 = vmatprep.subr.mxu0 0.0
    %235 = vmatpush2.msra.mxu0 0.0
    %236 = vmatprep.subr.mxu0 0.0
    %237 = vmatpush2.msra.mxu0 0.0
    %238 = vmatprep.subr.mxu0 0.0
    %239 = vmatpush2.msra.mxu0 0.0
    %240 = vmatprep.subr.mxu0 0.0
    %241 = vmatpush2.msra.mxu0 0.0
    %242 = vmatprep.subr.mxu0 0.0
    %243 = vmatpush2.msra.mxu0 0.0
    %244 = vmatprep.subr.mxu0 0.0
    %245 = vmatpush2.msra.mxu0 0.0
    %246 = vmatprep.subr.mxu0 0.0
    %247 = vmatpush2.msra.mxu0 0.0
    %248 = vmatprep.subr.mxu0 0.0
    %249 = vmatpush2.msra.mxu0 0.0
    %250 = vmatprep.subr.mxu0 0.0
    %251 = vmatpush2.msra.mxu0 0.0
    %252 = vmatprep.subr.mxu0 0.0
    %253 = vmatpush2.msra.mxu0 0.0
    %254 = vmatprep.subr.mxu0 0.0
    %255 = vmatpush2.msra.mxu0 0.0
    %256 = vmatprep.subr.mxu0 0.0
    %257 = vmatpush2.msra.mxu0 0.0
    %258 = vmatprep.subr.mxu0 0.0
    %259 = vmatpush2.msra.mxu0 0.0
    %260 = vmatprep.mubr.f32.mxu0 0.0
    %261 = vmatmul.mubr.f32.gmra.mxu0 %v185
    %v262 = vpop.f32.mrf.mxu0
    %v263 = vadd.f32 %v166, %v262
    %v264 = vpop.f32.mrf.mxu0
    %265 = vmatprep.mubr.f32.mxu0 0.0
    %266 = vmatmul.mubr.f32.gmra.mxu0 %v188
    %v267 = vpop.f32.mrf.mxu0
    %v268 = vadd.f32 %v171, %v267
    %v269 = vpop.f32.mrf.mxu0
    %270 = vmatprep.mubr.f32.mxu0 0.0
    %271 = vmatmul.mubr.f32.gmra.mxu0 %v191
    %v272 = vpop.f32.mrf.mxu0
    %v273 = vadd.f32 %v176, %v272
    %v274 = vpop.f32.mrf.mxu0
    %275 = vmatprep.mubr.f32.mxu0 0.0
    %276 = vmatmul.mubr.f32.gmra.mxu0 %v194
    %v277 = vpop.f32.mrf.mxu0
    %v278 = vadd.f32 %v181, %v277
    %v279 = vpop.f32.mrf.mxu0
    %280 = vdwg.mxu0
    %v281 = vld [vmem:[%s0 + $0x2] sm:$0xff]
    %v282 = vld [vmem:[%s0 + $0xa] sm:$0xff]
    %v283 = vld [vmem:[%s0 + $0x1a] sm:$0xff]
    %v284 = vld [vmem:[%s0 + $0x22] sm:$0xff]
    %s285 = scalar_lea.vmem %s1, 96
    %v286 = vld [vmem:[%s285] sm:$0xff]
    %v287 = vld [vmem:[%s285 + $0x8] sm:$0xff]
    %v288 = vld [vmem:[%s285 + $0x10] sm:$0xff]
    %v289 = vld [vmem:[%s285 + $0x18] sm:$0xff]
    %v290 = vld [vmem:[%s285 + $0x20] sm:$0xff]
    %v291 = vld [vmem:[%s285 + $0x28] sm:$0xff]
    %v293 = vsel %vm86, %v281, 0
    %v296 = vsel %vm86, %v282, 0
    %v299 = vsel %vm86, %v283, 0
    %v302 = vsel %vm86, %v284, 0
    %304 = vmatprep.subr.mxu0 0.0
    %305 = vmatpush1.msra.mxu0 0.0
    %306 = vmatprep.subr.mxu0 0.0
    %307 = vmatpush1.msra.mxu0 0.0
    %308 = vmatprep.subr.mxu0 0.0
    %309 = vmatpush1.msra.mxu0 0.0
    %310 = vmatprep.subr.mxu0 0.0
    %311 = vmatpush1.msra.mxu0 0.0
    %312 = vmatprep.subr.mxu0 0.0
    %313 = vmatpush1.msra.mxu0 0.0
    %314 = vmatprep.subr.mxu0 0.0
    %315 = vmatpush1.msra.mxu0 0.0
    %316 = vmatprep.subr.mxu0 0.0
    %317 = vmatpush1.msra.mxu0 0.0
    %318 = vmatprep.subr.mxu0 0.0
    %319 = vmatpush1.msra.mxu0 0.0
    %320 = vmatprep.subr.mxu0 0.0
    %321 = vmatpush1.msra.mxu0 0.0
    %322 = vmatprep.subr.mxu0 0.0
    %323 = vmatpush1.msra.mxu0 0.0
    %324 = vmatprep.subr.mxu0 0.0
    %325 = vmatpush1.msra.mxu0 %v291
    %326 = vmatprep.subr.mxu0 0.0
    %327 = vmatpush1.msra.mxu0 %v290
    %328 = vmatprep.subr.mxu0 0.0
    %329 = vmatpush1.msra.mxu0 %v289
    %330 = vmatprep.subr.mxu0 0.0
    %331 = vmatpush1.msra.mxu0 %v288
    %332 = vmatprep.subr.mxu0 0.0
    %333 = vmatpush1.msra.mxu0 %v287
    %334 = vmatprep.subr.mxu0 0.0
    %335 = vmatpush1.msra.mxu0 %v286
    %336 = vmatprep.subr.mxu0 0.0
    %337 = vmatpush2.msra.mxu0 0.0
    %338 = vmatprep.subr.mxu0 0.0
    %339 = vmatpush2.msra.mxu0 0.0
    %340 = vmatprep.subr.mxu0 0.0
    %341 = vmatpush2.msra.mxu0 0.0
    %342 = vmatprep.subr.mxu0 0.0
    %343 = vmatpush2.msra.mxu0 0.0
    %344 = vmatprep.subr.mxu0 0.0
    %345 = vmatpush2.msra.mxu0 0.0
    %346 = vmatprep.subr.mxu0 0.0
    %347 = vmatpush2.msra.mxu0 0.0
    %348 = vmatprep.subr.mxu0 0.0
    %349 = vmatpush2.msra.mxu0 0.0
    %350 = vmatprep.subr.mxu0 0.0
    %351 = vmatpush2.msra.mxu0 0.0
    %352 = vmatprep.subr.mxu0 0.0
    %353 = vmatpush2.msra.mxu0 0.0
    %354 = vmatprep.subr.mxu0 0.0
    %355 = vmatpush2.msra.mxu0 0.0
    %356 = vmatprep.subr.mxu0 0.0
    %357 = vmatpush2.msra.mxu0 0.0
    %358 = vmatprep.subr.mxu0 0.0
    %359 = vmatpush2.msra.mxu0 0.0
    %360 = vmatprep.subr.mxu0 0.0
    %361 = vmatpush2.msra.mxu0 0.0
    %362 = vmatprep.subr.mxu0 0.0
    %363 = vmatpush2.msra.mxu0 0.0
    %364 = vmatprep.subr.mxu0 0.0
    %365 = vmatpush2.msra.mxu0 0.0
    %366 = vmatprep.subr.mxu0 0.0
    %367 = vmatpush2.msra.mxu0 0.0
    %368 = vmatprep.mubr.f32.mxu0 0.0
    %369 = vmatmul.mubr.f32.gmra.mxu0 %v293
    %v370 = vpop.f32.mrf.mxu0
    %v371 = vadd.f32 0.0, %v370
    %v372 = vpop.f32.mrf.mxu0
    %373 = vmatprep.mubr.f32.mxu0 0.0
    %374 = vmatmul.mubr.f32.gmra.mxu0 %v296
    %v375 = vpop.f32.mrf.mxu0
    %v376 = vadd.f32 0.0, %v375
    %v377 = vpop.f32.mrf.mxu0
    %378 = vmatprep.mubr.f32.mxu0 0.0
    %379 = vmatmul.mubr.f32.gmra.mxu0 %v299
    %v380 = vpop.f32.mrf.mxu0
    %v381 = vadd.f32 0.0, %v380
    %v382 = vpop.f32.mrf.mxu0
    %383 = vmatprep.mubr.f32.mxu0 0.0
    %384 = vmatmul.mubr.f32.gmra.mxu0 %v302
    %v385 = vpop.f32.mrf.mxu0
    %v386 = vadd.f32 0.0, %v385
    %v387 = vpop.f32.mrf.mxu0
    %388 = vdwg.mxu0
    %v389 = vadd.f32 %v263, %v371
    %v390 = vadd.f32 %v268, %v376
    %v391 = vadd.f32 %v273, %v381
    %v392 = vadd.f32 %v278, %v386
    %v393 = vld [vmem:[%s2] sm:$0x1]
    %v395 = vlaneseq
    %v396 = vshrl.u32 %v395, 7
    %v397 = vsub.s32 0, %v396
    %v398 = vrot.slane %v393, %v397
    %v400 = vadd.f32 %v389, %v398
    %v401 = vadd.f32 %v390, %v398
    %v402 = vadd.f32 %v391, %v398
    %v403 = vadd.f32 %v392, %v398
    %v404 = vmax.f32 %v400, 0.0
    %v405 = vmax.f32 %v401, 0.0
    %v406 = vmax.f32 %v402, 0.0
    %v407 = vmax.f32 %v403, 0.0
    %408 = vst [vmem:[#allocation2] sm:$0x1] 0.0
    %409 = vst [vmem:[#allocation2 + $0x18] sm:$0x1] 0.0
    %410 = vst [vmem:[#allocation2 + $0x11] sm:$0x1] 0.0
    %411 = vst [vmem:[#allocation2 + $0x29] sm:$0x1] 0.0
    %412 = vst [vmem:[#allocation2 + $0x1] sm:$0xff] %v404
    %413 = vst [vmem:[#allocation2 + $0x9] sm:$0xff] %v405
    %414 = vst [vmem:[#allocation2 + $0x19] sm:$0xff] %v406
    %415 = vst [vmem:[#allocation2 + $0x21] sm:$0xff] %v407
    %v416 = vld [vmem:[#allocation2] sm:$0xff]
    %v417 = vld [vmem:[#allocation2 + $0x8] sm:$0xff]
    %v418 = vld [vmem:[#allocation2 + $0x18] sm:$0xff]
    %v419 = vld [vmem:[#allocation2 + $0x20] sm:$0xff]
    %v420 = vld [vmem:[%s3] sm:$0xff]
    %v421 = vld [vmem:[%s3 + $0x8] sm:$0xff]
    %v422 = vld [vmem:[%s3 + $0x10] sm:$0xff]
    %v423 = vld [vmem:[%s3 + $0x18] sm:$0xff]
    %v424 = vld [vmem:[%s3 + $0x20] sm:$0xff]
    %v425 = vld [vmem:[%s3 + $0x28] sm:$0xff]
    %v426 = vld [vmem:[%s3 + $0x30] sm:$0xff]
    %v427 = vld [vmem:[%s3 + $0x38] sm:$0xff]
    %v428 = vld [vmem:[%s3 + $0x40] sm:$0xff]
    %v429 = vld [vmem:[%s3 + $0x48] sm:$0xff]
    %v430 = vld [vmem:[%s3 + $0x50] sm:$0xff]
    %v431 = vld [vmem:[%s3 + $0x58] sm:$0xff]
    %v432 = vld [vmem:[%s3 + $0x60] sm:$0xff]
    %v433 = vld [vmem:[%s3 + $0x68] sm:$0xff]
    %v434 = vld [vmem:[%s3 + $0x70] sm:$0xff]
    %v435 = vld [vmem:[%s3 + $0x78] sm:$0xff]
    %v436 = vld [vmem:[#allocation2 + $0x1] sm:$0xff]
    %v437 = vld [vmem:[#allocation2 + $0x9] sm:$0xff]
    %v438 = vld [vmem:[#allocation2 + $0x19] sm:$0xff]
    %v439 = vld [vmem:[#allocation2 + $0x21] sm:$0xff]
    %s440 = scalar_lea.vmem %s3, 128
    %v441 = vld [vmem:[%s440] sm:$0xff]
    %v442 = vld [vmem:[%s440 + $0x8] sm:$0xff]
    %v443 = vld [vmem:[%s440 + $0x10] sm:$0xff]
    %v444 = vld [vmem:[%s440 + $0x18] sm:$0xff]
    %v445 = vld [vmem:[%s440 + $0x20] sm:$0xff]
    %v446 = vld [vmem:[%s440 + $0x28] sm:$0xff]
    %v447 = vld [vmem:[%s440 + $0x30] sm:$0xff]
    %v448 = vld [vmem:[%s440 + $0x38] sm:$0xff]
    %v449 = vld [vmem:[%s440 + $0x40] sm:$0xff]
    %v450 = vld [vmem:[%s440 + $0x48] sm:$0xff]
    %v451 = vld [vmem:[%s440 + $0x50] sm:$0xff]
    %v452 = vld [vmem:[%s440 + $0x58] sm:$0xff]
    %v453 = vld [vmem:[%s440 + $0x60] sm:$0xff]
    %v454 = vld [vmem:[%s440 + $0x68] sm:$0xff]
    %v455 = vld [vmem:[%s440 + $0x70] sm:$0xff]
    %v456 = vld [vmem:[%s440 + $0x78] sm:$0xff]
    %457 = vmatprep.subr.mxu0 0.0
    %458 = vmatpush1.msra.mxu0 %v456
    %459 = vmatprep.subr.mxu0 0.0
    %460 = vmatpush1.msra.mxu0 %v455
    %461 = vmatprep.subr.mxu0 0.0
    %462 = vmatpush1.msra.mxu0 %v454
    %463 = vmatprep.subr.mxu0 0.0
    %464 = vmatpush1.msra.mxu0 %v453
    %465 = vmatprep.subr.mxu0 0.0
    %466 = vmatpush1.msra.mxu0 %v452
    %467 = vmatprep.subr.mxu0 0.0
    %468 = vmatpush1.msra.mxu0 %v451
    %469 = vmatprep.subr.mxu0 0.0
    %470 = vmatpush1.msra.mxu0 %v450
    %471 = vmatprep.subr.mxu0 0.0
    %472 = vmatpush1.msra.mxu0 %v449
    %473 = vmatprep.subr.mxu0 0.0
    %474 = vmatpush1.msra.mxu0 %v448
    %475 = vmatprep.subr.mxu0 0.0
    %476 = vmatpush1.msra.mxu0 %v447
    %477 = vmatprep.subr.mxu0 0.0
    %478 = vmatpush1.msra.mxu0 %v446
    %479 = vmatprep.subr.mxu0 0.0
    %480 = vmatpush1.msra.mxu0 %v445
    %481 = vmatprep.subr.mxu0 0.0
    %482 = vmatpush1.msra.mxu0 %v444
    %483 = vmatprep.subr.mxu0 0.0
    %484 = vmatpush1.msra.mxu0 %v443
    %485 = vmatprep.subr.mxu0 0.0
    %486 = vmatpush1.msra.mxu0 %v442
    %487 = vmatprep.subr.mxu0 0.0
    %488 = vmatpush1.msra.mxu0 %v441
    %489 = vmatprep.subr.mxu0 0.0
    %490 = vmatpush2.msra.mxu0 0.0
    %491 = vmatprep.subr.mxu0 0.0
    %492 = vmatpush2.msra.mxu0 0.0
    %493 = vmatprep.subr.mxu0 0.0
    %494 = vmatpush2.msra.mxu0 0.0
    %495 = vmatprep.subr.mxu0 0.0
    %496 = vmatpush2.msra.mxu0 0.0
    %497 = vmatprep.subr.mxu0 0.0
    %498 = vmatpush2.msra.mxu0 0.0
    %499 = vmatprep.subr.mxu0 0.0
    %500 = vmatpush2.msra.mxu0 0.0
    %501 = vmatprep.subr.mxu0 0.0
    %502 = vmatpush2.msra.mxu0 0.0
    %503 = vmatprep.subr.mxu0 0.0
    %504 = vmatpush2.msra.mxu0 0.0
    %505 = vmatprep.subr.mxu0 0.0
    %506 = vmatpush2.msra.mxu0 0.0
    %507 = vmatprep.subr.mxu0 0.0
    %508 = vmatpush2.msra.mxu0 0.0
    %509 = vmatprep.subr.mxu0 0.0
    %510 = vmatpush2.msra.mxu0 0.0
    %511 = vmatprep.subr.mxu0 0.0
    %512 = vmatpush2.msra.mxu0 0.0
    %513 = vmatprep.subr.mxu0 0.0
    %514 = vmatpush2.msra.mxu0 0.0
    %515 = vmatprep.subr.mxu0 0.0
    %516 = vmatpush2.msra.mxu0 0.0
    %517 = vmatprep.subr.mxu0 0.0
    %518 = vmatpush2.msra.mxu0 0.0
    %519 = vmatprep.subr.mxu0 0.0
    %520 = vmatpush2.msra.mxu0 0.0
    %521 = vmatprep.mubr.f32.mxu0 0.0
    %522 = vmatmul.mubr.f32.gmra.mxu0 %v436
    %v523 = vpop.f32.mrf.mxu0
    %v524 = vadd.f32 0.0, %v523
    %v525 = vpop.f32.mrf.mxu0
    %526 = vmatprep.mubr.f32.mxu0 0.0
    %527 = vmatmul.mubr.f32.gmra.mxu0 %v437
    %v528 = vpop.f32.mrf.mxu0
    %v529 = vadd.f32 0.0, %v528
    %v530 = vpop.f32.mrf.mxu0
    %531 = vmatprep.mubr.f32.mxu0 0.0
    %532 = vmatmul.mubr.f32.gmra.mxu0 %v438
    %v533 = vpop.f32.mrf.mxu0
    %v534 = vadd.f32 0.0, %v533
    %v535 = vpop.f32.mrf.mxu0
    %536 = vmatprep.mubr.f32.mxu0 0.0
    %537 = vmatmul.mubr.f32.gmra.mxu0 %v439
    %v538 = vpop.f32.mrf.mxu0
    %v539 = vadd.f32 0.0, %v538
    %v540 = vpop.f32.mrf.mxu0
    %541 = vdwg.mxu0
    %542 = vmatprep.subr.mxu0 0.0
    %543 = vmatpush1.msra.mxu0 %v435
    %544 = vmatprep.subr.mxu0 0.0
    %545 = vmatpush1.msra.mxu0 %v434
    %546 = vmatprep.subr.mxu0 0.0
    %547 = vmatpush1.msra.mxu0 %v433
    %548 = vmatprep.subr.mxu0 0.0
    %549 = vmatpush1.msra.mxu0 %v432
    %550 = vmatprep.subr.mxu0 0.0
    %551 = vmatpush1.msra.mxu0 %v431
    %552 = vmatprep.subr.mxu0 0.0
    %553 = vmatpush1.msra.mxu0 %v430
    %554 = vmatprep.subr.mxu0 0.0
    %555 = vmatpush1.msra.mxu0 %v429
    %556 = vmatprep.subr.mxu0 0.0
    %557 = vmatpush1.msra.mxu0 %v428
    %558 = vmatprep.subr.mxu0 0.0
    %559 = vmatpush1.msra.mxu0 %v427
    %560 = vmatprep.subr.mxu0 0.0
    %561 = vmatpush1.msra.mxu0 %v426
    %562 = vmatprep.subr.mxu0 0.0
    %563 = vmatpush1.msra.mxu0 %v425
    %564 = vmatprep.subr.mxu0 0.0
    %565 = vmatpush1.msra.mxu0 %v424
    %566 = vmatprep.subr.mxu0 0.0
    %567 = vmatpush1.msra.mxu0 %v423
    %568 = vmatprep.subr.mxu0 0.0
    %569 = vmatpush1.msra.mxu0 %v422
    %570 = vmatprep.subr.mxu0 0.0
    %571 = vmatpush1.msra.mxu0 %v421
    %572 = vmatprep.subr.mxu0 0.0
    %573 = vmatpush1.msra.mxu0 %v420
    %574 = vmatprep.subr.mxu0 0.0
    %575 = vmatpush2.msra.mxu0 0.0
    %576 = vmatprep.subr.mxu0 0.0
    %577 = vmatpush2.msra.mxu0 0.0
    %578 = vmatprep.subr.mxu0 0.0
    %579 = vmatpush2.msra.mxu0 0.0
    %580 = vmatprep.subr.mxu0 0.0
    %581 = vmatpush2.msra.mxu0 0.0
    %582 = vmatprep.subr.mxu0 0.0
    %583 = vmatpush2.msra.mxu0 0.0
    %584 = vmatprep.subr.mxu0 0.0
    %585 = vmatpush2.msra.mxu0 0.0
    %586 = vmatprep.subr.mxu0 0.0
    %587 = vmatpush2.msra.mxu0 0.0
    %588 = vmatprep.subr.mxu0 0.0
    %589 = vmatpush2.msra.mxu0 0.0
    %590 = vmatprep.subr.mxu0 0.0
    %591 = vmatpush2.msra.mxu0 0.0
    %592 = vmatprep.subr.mxu0 0.0
    %593 = vmatpush2.msra.mxu0 0.0
    %594 = vmatprep.subr.mxu0 0.0
    %595 = vmatpush2.msra.mxu0 0.0
    %596 = vmatprep.subr.mxu0 0.0
    %597 = vmatpush2.msra.mxu0 0.0
    %598 = vmatprep.subr.mxu0 0.0
    %599 = vmatpush2.msra.mxu0 0.0
    %600 = vmatprep.subr.mxu0 0.0
    %601 = vmatpush2.msra.mxu0 0.0
    %602 = vmatprep.subr.mxu0 0.0
    %603 = vmatpush2.msra.mxu0 0.0
    %604 = vmatprep.subr.mxu0 0.0
    %605 = vmatpush2.msra.mxu0 0.0
    %606 = vmatprep.mubr.f32.mxu0 0.0
    %607 = vmatmul.mubr.f32.gmra.mxu0 %v416
    %v608 = vpop.f32.mrf.mxu0
    %v609 = vadd.f32 %v524, %v608
    %v610 = vpop.f32.mrf.mxu0
    %611 = vmatprep.mubr.f32.mxu0 0.0
    %612 = vmatmul.mubr.f32.gmra.mxu0 %v417
    %v613 = vpop.f32.mrf.mxu0
    %v614 = vadd.f32 %v529, %v613
    %v615 = vpop.f32.mrf.mxu0
    %616 = vmatprep.mubr.f32.mxu0 0.0
    %617 = vmatmul.mubr.f32.gmra.mxu0 %v418
    %v618 = vpop.f32.mrf.mxu0
    %v619 = vadd.f32 %v534, %v618
    %v620 = vpop.f32.mrf.mxu0
    %621 = vmatprep.mubr.f32.mxu0 0.0
    %622 = vmatmul.mubr.f32.gmra.mxu0 %v419
    %v623 = vpop.f32.mrf.mxu0
    %v624 = vadd.f32 %v539, %v623
    %v625 = vpop.f32.mrf.mxu0
    %626 = vdwg.mxu0
    %v627 = vld [vmem:[#allocation2 + $0x2] sm:$0xff]
    %v628 = vld [vmem:[#allocation2 + $0xa] sm:$0xff]
    %v629 = vld [vmem:[#allocation2 + $0x1a] sm:$0xff]
    %v630 = vld [vmem:[#allocation2 + $0x22] sm:$0xff]
    %s631 = scalar_lea.vmem %s3, 256
    %v632 = vld [vmem:[%s631] sm:$0xff]
    %v633 = vld [vmem:[%s631 + $0x8] sm:$0xff]
    %v634 = vld [vmem:[%s631 + $0x10] sm:$0xff]
    %v635 = vld [vmem:[%s631 + $0x18] sm:$0xff]
    %v636 = vld [vmem:[%s631 + $0x20] sm:$0xff]
    %v637 = vld [vmem:[%s631 + $0x28] sm:$0xff]
    %v638 = vld [vmem:[%s631 + $0x30] sm:$0xff]
    %v639 = vld [vmem:[%s631 + $0x38] sm:$0xff]
    %v640 = vld [vmem:[%s631 + $0x40] sm:$0xff]
    %v641 = vld [vmem:[%s631 + $0x48] sm:$0xff]
    %v642 = vld [vmem:[%s631 + $0x50] sm:$0xff]
    %v643 = vld [vmem:[%s631 + $0x58] sm:$0xff]
    %v644 = vld [vmem:[%s631 + $0x60] sm:$0xff]
    %v645 = vld [vmem:[%s631 + $0x68] sm:$0xff]
    %v646 = vld [vmem:[%s631 + $0x70] sm:$0xff]
    %v647 = vld [vmem:[%s631 + $0x78] sm:$0xff]
    %648 = vmatprep.subr.mxu0 0.0
    %649 = vmatpush1.msra.mxu0 %v647
    %650 = vmatprep.subr.mxu0 0.0
    %651 = vmatpush1.msra.mxu0 %v646
    %652 = vmatprep.subr.mxu0 0.0
    %653 = vmatpush1.msra.mxu0 %v645
    %654 = vmatprep.subr.mxu0 0.0
    %655 = vmatpush1.msra.mxu0 %v644
    %656 = vmatprep.subr.mxu0 0.0
    %657 = vmatpush1.msra.mxu0 %v643
    %658 = vmatprep.subr.mxu0 0.0
    %659 = vmatpush1.msra.mxu0 %v642
    %660 = vmatprep.subr.mxu0 0.0
    %661 = vmatpush1.msra.mxu0 %v641
    %662 = vmatprep.subr.mxu0 0.0
    %663 = vmatpush1.msra.mxu0 %v640
    %664 = vmatprep.subr.mxu0 0.0
    %665 = vmatpush1.msra.mxu0 %v639
    %666 = vmatprep.subr.mxu0 0.0
    %667 = vmatpush1.msra.mxu0 %v638
    %668 = vmatprep.subr.mxu0 0.0
    %669 = vmatpush1.msra.mxu0 %v637
    %670 = vmatprep.subr.mxu0 0.0
    %671 = vmatpush1.msra.mxu0 %v636
    %672 = vmatprep.subr.mxu0 0.0
    %673 = vmatpush1.msra.mxu0 %v635
    %674 = vmatprep.subr.mxu0 0.0
    %675 = vmatpush1.msra.mxu0 %v634
    %676 = vmatprep.subr.mxu0 0.0
    %677 = vmatpush1.msra.mxu0 %v633
    %678 = vmatprep.subr.mxu0 0.0
    %679 = vmatpush1.msra.mxu0 %v632
    %680 = vmatprep.subr.mxu0 0.0
    %681 = vmatpush2.msra.mxu0 0.0
    %682 = vmatprep.subr.mxu0 0.0
    %683 = vmatpush2.msra.mxu0 0.0
    %684 = vmatprep.subr.mxu0 0.0
    %685 = vmatpush2.msra.mxu0 0.0
    %686 = vmatprep.subr.mxu0 0.0
    %687 = vmatpush2.msra.mxu0 0.0
    %688 = vmatprep.subr.mxu0 0.0
    %689 = vmatpush2.msra.mxu0 0.0
    %690 = vmatprep.subr.mxu0 0.0
    %691 = vmatpush2.msra.mxu0 0.0
    %692 = vmatprep.subr.mxu0 0.0
    %693 = vmatpush2.msra.mxu0 0.0
    %694 = vmatprep.subr.mxu0 0.0
    %695 = vmatpush2.msra.mxu0 0.0
    %696 = vmatprep.subr.mxu0 0.0
    %697 = vmatpush2.msra.mxu0 0.0
    %698 = vmatprep.subr.mxu0 0.0
    %699 = vmatpush2.msra.mxu0 0.0
    %700 = vmatprep.subr.mxu0 0.0
    %701 = vmatpush2.msra.mxu0 0.0
    %702 = vmatprep.subr.mxu0 0.0
    %703 = vmatpush2.msra.mxu0 0.0
    %704 = vmatprep.subr.mxu0 0.0
    %705 = vmatpush2.msra.mxu0 0.0
    %706 = vmatprep.subr.mxu0 0.0
    %707 = vmatpush2.msra.mxu0 0.0
    %708 = vmatprep.subr.mxu0 0.0
    %709 = vmatpush2.msra.mxu0 0.0
    %710 = vmatprep.subr.mxu0 0.0
    %711 = vmatpush2.msra.mxu0 0.0
    %712 = vmatprep.mubr.f32.mxu0 0.0
    %713 = vmatmul.mubr.f32.gmra.mxu0 %v627
    %v714 = vpop.f32.mrf.mxu0
    %v715 = vadd.f32 0.0, %v714
    %v716 = vpop.f32.mrf.mxu0
    %717 = vmatprep.mubr.f32.mxu0 0.0
    %718 = vmatmul.mubr.f32.gmra.mxu0 %v628
    %v719 = vpop.f32.mrf.mxu0
    %v720 = vadd.f32 0.0, %v719
    %v721 = vpop.f32.mrf.mxu0
    %722 = vmatprep.mubr.f32.mxu0 0.0
    %723 = vmatmul.mubr.f32.gmra.mxu0 %v629
    %v724 = vpop.f32.mrf.mxu0
    %v725 = vadd.f32 0.0, %v724
    %v726 = vpop.f32.mrf.mxu0
    %727 = vmatprep.mubr.f32.mxu0 0.0
    %728 = vmatmul.mubr.f32.gmra.mxu0 %v630
    %v729 = vpop.f32.mrf.mxu0
    %v730 = vadd.f32 0.0, %v729
    %v731 = vpop.f32.mrf.mxu0
    %732 = vdwg.mxu0
    %v733 = vadd.f32 %v609, %v715
    %v734 = vadd.f32 %v614, %v720
    %v735 = vadd.f32 %v619, %v725
    %v736 = vadd.f32 %v624, %v730
    %v737 = vld [vmem:[%s4] sm:$0x1]
    %v739 = vlaneseq
    %v740 = vshrl.u32 %v739, 7
    %v741 = vsub.s32 0, %v740
    %v742 = vrot.slane %v737, %v741
    %v744 = vadd.f32 %v733, %v742
    %v745 = vadd.f32 %v734, %v742
    %v746 = vadd.f32 %v735, %v742
    %v747 = vadd.f32 %v736, %v742
    %v748 = vmax.f32 %v744, 0.0
    %v749 = vmax.f32 %v745, 0.0
    %v750 = vmax.f32 %v746, 0.0
    %v751 = vmax.f32 %v747, 0.0
    %752 = vst [vmem:[#allocation5] sm:$0xff] %v748
    %753 = vst [vmem:[#allocation5 + $0x8] sm:$0xff] %v749
    %754 = vst [vmem:[#allocation5 + $0x10] sm:$0xff] %v750
    %755 = vst [vmem:[#allocation5 + $0x18] sm:$0xff] %v751
    %v756 = vld [vmem:[#allocation5] ss:$2 sm:$0xff]
    %s757 = scalar_lea.vmem [#allocation5], 16
    %v758 = vld [vmem:[%s757] ss:$2 sm:$0xff]
    %s759 = scalar_lea.vmem [#allocation5], 1
    %v760 = vld [vmem:[%s759] ss:$2 sm:$0xff]
    %s761 = scalar_lea.vmem [#allocation5], 17
    %v762 = vld [vmem:[%s761] ss:$2 sm:$0xff]
    %v763 = vmax.f32 %v756, %v760
    %v764 = vmax.f32 %v758, %v762
    %767 = vrot.lane.b32.xlu0 %v763, 120
    %v768 = vpop.permute.xlu0 %767
    %769 = vrot.lane.b32.xlu0 %v764, 120
    %v770 = vpop.permute.xlu0 %769
    %vm773 = vcmask 982016
    %v774 = vsel %vm773, %v768, 0.0
    %v775 = vsel %vm773, %v770, 0.0
    %v776 = vmax.f32 %v763, %v774
    %v777 = vmax.f32 %v764, %v775
    %778 = vst [vmem:[#allocation3] sm:$0x1] 0.0
    %779 = vst [vmem:[#allocation3 + $0x10] sm:$0x1] 0.0
    %780 = vst [vmem:[#allocation3 + $0x9] sm:$0x1] 0.0
    %781 = vst [vmem:[#allocation3 + $0x19] sm:$0x1] 0.0
    %782 = vst [vmem:[#allocation3 + $0x1] sm:$0xff] %v776
    %783 = vst [vmem:[#allocation3 + $0x11] sm:$0xff] %v777
    %v784 = vld [vmem:[#allocation3] sm:$0xff]
    %v785 = vld [vmem:[#allocation3 + $0x10] sm:$0xff]
    %v786 = vld [vmem:[%s5] sm:$0xff]
    %v787 = vld [vmem:[%s5 + $0x8] sm:$0xff]
    %v788 = vld [vmem:[%s5 + $0x10] sm:$0xff]
    %v789 = vld [vmem:[%s5 + $0x18] sm:$0xff]
    %v790 = vld [vmem:[%s5 + $0x20] sm:$0xff]
    %v791 = vld [vmem:[%s5 + $0x28] sm:$0xff]
    %v792 = vld [vmem:[%s5 + $0x30] sm:$0xff]
    %v793 = vld [vmem:[%s5 + $0x38] sm:$0xff]
    %v794 = vld [vmem:[%s5 + $0x40] sm:$0xff]
    %v795 = vld [vmem:[%s5 + $0x48] sm:$0xff]
    %v796 = vld [vmem:[%s5 + $0x50] sm:$0xff]
    %v797 = vld [vmem:[%s5 + $0x58] sm:$0xff]
    %v798 = vld [vmem:[%s5 + $0x60] sm:$0xff]
    %v799 = vld [vmem:[%s5 + $0x68] sm:$0xff]
    %v800 = vld [vmem:[%s5 + $0x70] sm:$0xff]
    %v801 = vld [vmem:[%s5 + $0x78] sm:$0xff]
    %v802 = vld [vmem:[#allocation3 + $0x1] sm:$0xff]
    %v803 = vld [vmem:[#allocation3 + $0x11] sm:$0xff]
    %s804 = scalar_lea.vmem %s5, 128
    %v805 = vld [vmem:[%s804] sm:$0xff]
    %v806 = vld [vmem:[%s804 + $0x8] sm:$0xff]
    %v807 = vld [vmem:[%s804 + $0x10] sm:$0xff]
    %v808 = vld [vmem:[%s804 + $0x18] sm:$0xff]
    %v809 = vld [vmem:[%s804 + $0x20] sm:$0xff]
    %v810 = vld [vmem:[%s804 + $0x28] sm:$0xff]
    %v811 = vld [vmem:[%s804 + $0x30] sm:$0xff]
    %v812 = vld [vmem:[%s804 + $0x38] sm:$0xff]
    %v813 = vld [vmem:[%s804 + $0x40] sm:$0xff]
    %v814 = vld [vmem:[%s804 + $0x48] sm:$0xff]
    %v815 = vld [vmem:[%s804 + $0x50] sm:$0xff]
    %v816 = vld [vmem:[%s804 + $0x58] sm:$0xff]
    %v817 = vld [vmem:[%s804 + $0x60] sm:$0xff]
    %v818 = vld [vmem:[%s804 + $0x68] sm:$0xff]
    %v819 = vld [vmem:[%s804 + $0x70] sm:$0xff]
    %v820 = vld [vmem:[%s804 + $0x78] sm:$0xff]
    %821 = vmatprep.subr.mxu0 0.0
    %822 = vmatpush1.msra.mxu0 %v820
    %823 = vmatprep.subr.mxu0 0.0
    %824 = vmatpush1.msra.mxu0 %v819
    %825 = vmatprep.subr.mxu0 0.0
    %826 = vmatpush1.msra.mxu0 %v818
    %827 = vmatprep.subr.mxu0 0.0
    %828 = vmatpush1.msra.mxu0 %v817
    %829 = vmatprep.subr.mxu0 0.0
    %830 = vmatpush1.msra.mxu0 %v816
    %831 = vmatprep.subr.mxu0 0.0
    %832 = vmatpush1.msra.mxu0 %v815
    %833 = vmatprep.subr.mxu0 0.0
    %834 = vmatpush1.msra.mxu0 %v814
    %835 = vmatprep.subr.mxu0 0.0
    %836 = vmatpush1.msra.mxu0 %v813
    %837 = vmatprep.subr.mxu0 0.0
    %838 = vmatpush1.msra.mxu0 %v812
    %839 = vmatprep.subr.mxu0 0.0
    %840 = vmatpush1.msra.mxu0 %v811
    %841 = vmatprep.subr.mxu0 0.0
    %842 = vmatpush1.msra.mxu0 %v810
    %843 = vmatprep.subr.mxu0 0.0
    %844 = vmatpush1.msra.mxu0 %v809
    %845 = vmatprep.subr.mxu0 0.0
    %846 = vmatpush1.msra.mxu0 %v808
    %847 = vmatprep.subr.mxu0 0.0
    %848 = vmatpush1.msra.mxu0 %v807
    %849 = vmatprep.subr.mxu0 0.0
    %850 = vmatpush1.msra.mxu0 %v806
    %851 = vmatprep.subr.mxu0 0.0
    %852 = vmatpush1.msra.mxu0 %v805
    %853 = vmatprep.subr.mxu0 0.0
    %854 = vmatpush2.msra.mxu0 0.0
    %855 = vmatprep.subr.mxu0 0.0
    %856 = vmatpush2.msra.mxu0 0.0
    %857 = vmatprep.subr.mxu0 0.0
    %858 = vmatpush2.msra.mxu0 0.0
    %859 = vmatprep.subr.mxu0 0.0
    %860 = vmatpush2.msra.mxu0 0.0
    %861 = vmatprep.subr.mxu0 0.0
    %862 = vmatpush2.msra.mxu0 0.0
    %863 = vmatprep.subr.mxu0 0.0
    %864 = vmatpush2.msra.mxu0 0.0
    %865 = vmatprep.subr.mxu0 0.0
    %866 = vmatpush2.msra.mxu0 0.0
    %867 = vmatprep.subr.mxu0 0.0
    %868 = vmatpush2.msra.mxu0 0.0
    %869 = vmatprep.subr.mxu0 0.0
    %870 = vmatpush2.msra.mxu0 0.0
    %871 = vmatprep.subr.mxu0 0.0
    %872 = vmatpush2.msra.mxu0 0.0
    %873 = vmatprep.subr.mxu0 0.0
    %874 = vmatpush2.msra.mxu0 0.0
    %875 = vmatprep.subr.mxu0 0.0
    %876 = vmatpush2.msra.mxu0 0.0
    %877 = vmatprep.subr.mxu0 0.0
    %878 = vmatpush2.msra.mxu0 0.0
    %879 = vmatprep.subr.mxu0 0.0
    %880 = vmatpush2.msra.mxu0 0.0
    %881 = vmatprep.subr.mxu0 0.0
    %882 = vmatpush2.msra.mxu0 0.0
    %883 = vmatprep.subr.mxu0 0.0
    %884 = vmatpush2.msra.mxu0 0.0
    %885 = vmatprep.mubr.f32.mxu0 0.0
    %886 = vmatmul.mubr.f32.gmra.mxu0 %v802
    %v887 = vpop.f32.mrf.mxu0
    %v888 = vadd.f32 0.0, %v887
    %v889 = vpop.f32.mrf.mxu0
    %890 = vmatprep.mubr.f32.mxu0 0.0
    %891 = vmatmul.mubr.f32.gmra.mxu0 %v803
    %v892 = vpop.f32.mrf.mxu0
    %v893 = vadd.f32 0.0, %v892
    %v894 = vpop.f32.mrf.mxu0
    %895 = vdwg.mxu0
    %896 = vmatprep.subr.mxu0 0.0
    %897 = vmatpush1.msra.mxu0 %v801
    %898 = vmatprep.subr.mxu0 0.0
    %899 = vmatpush1.msra.mxu0 %v800
    %900 = vmatprep.subr.mxu0 0.0
    %901 = vmatpush1.msra.mxu0 %v799
    %902 = vmatprep.subr.mxu0 0.0
    %903 = vmatpush1.msra.mxu0 %v798
    %904 = vmatprep.subr.mxu0 0.0
    %905 = vmatpush1.msra.mxu0 %v797
    %906 = vmatprep.subr.mxu0 0.0
    %907 = vmatpush1.msra.mxu0 %v796
    %908 = vmatprep.subr.mxu0 0.0
    %909 = vmatpush1.msra.mxu0 %v795
    %910 = vmatprep.subr.mxu0 0.0
    %911 = vmatpush1.msra.mxu0 %v794
    %912 = vmatprep.subr.mxu0 0.0
    %913 = vmatpush1.msra.mxu0 %v793
    %914 = vmatprep.subr.mxu0 0.0
    %915 = vmatpush1.msra.mxu0 %v792
    %916 = vmatprep.subr.mxu0 0.0
    %917 = vmatpush1.msra.mxu0 %v791
    %918 = vmatprep.subr.mxu0 0.0
    %919 = vmatpush1.msra.mxu0 %v790
    %920 = vmatprep.subr.mxu0 0.0
    %921 = vmatpush1.msra.mxu0 %v789
    %922 = vmatprep.subr.mxu0 0.0
    %923 = vmatpush1.msra.mxu0 %v788
    %924 = vmatprep.subr.mxu0 0.0
    %925 = vmatpush1.msra.mxu0 %v787
    %926 = vmatprep.subr.mxu0 0.0
    %927 = vmatpush1.msra.mxu0 %v786
    %928 = vmatprep.subr.mxu0 0.0
    %929 = vmatpush2.msra.mxu0 0.0
    %930 = vmatprep.subr.mxu0 0.0
    %931 = vmatpush2.msra.mxu0 0.0
    %932 = vmatprep.subr.mxu0 0.0
    %933 = vmatpush2.msra.mxu0 0.0
    %934 = vmatprep.subr.mxu0 0.0
    %935 = vmatpush2.msra.mxu0 0.0
    %936 = vmatprep.subr.mxu0 0.0
    %937 = vmatpush2.msra.mxu0 0.0
    %938 = vmatprep.subr.mxu0 0.0
    %939 = vmatpush2.msra.mxu0 0.0
    %940 = vmatprep.subr.mxu0 0.0
    %941 = vmatpush2.msra.mxu0 0.0
    %942 = vmatprep.subr.mxu0 0.0
    %943 = vmatpush2.msra.mxu0 0.0
    %944 = vmatprep.subr.mxu0 0.0
    %945 = vmatpush2.msra.mxu0 0.0
    %946 = vmatprep.subr.mxu0 0.0
    %947 = vmatpush2.msra.mxu0 0.0
    %948 = vmatprep.subr.mxu0 0.0
    %949 = vmatpush2.msra.mxu0 0.0
    %950 = vmatprep.subr.mxu0 0.0
    %951 = vmatpush2.msra.mxu0 0.0
    %952 = vmatprep.subr.mxu0 0.0
    %953 = vmatpush2.msra.mxu0 0.0
    %954 = vmatprep.subr.mxu0 0.0
    %955 = vmatpush2.msra.mxu0 0.0
    %956 = vmatprep.subr.mxu0 0.0
    %957 = vmatpush2.msra.mxu0 0.0
    %958 = vmatprep.subr.mxu0 0.0
    %959 = vmatpush2.msra.mxu0 0.0
    %960 = vmatprep.mubr.f32.mxu0 0.0
    %961 = vmatmul.mubr.f32.gmra.mxu0 %v784
    %v962 = vpop.f32.mrf.mxu0
    %v963 = vadd.f32 %v888, %v962
    %v964 = vpop.f32.mrf.mxu0
    %965 = vmatprep.mubr.f32.mxu0 0.0
    %966 = vmatmul.mubr.f32.gmra.mxu0 %v785
    %v967 = vpop.f32.mrf.mxu0
    %v968 = vadd.f32 %v893, %v967
    %v969 = vpop.f32.mrf.mxu0
    %970 = vdwg.mxu0
    %v971 = vld [vmem:[#allocation3 + $0x2] sm:$0xff]
    %v972 = vld [vmem:[#allocation3 + $0x12] sm:$0xff]
    %s973 = scalar_lea.vmem %s5, 256
    %v974 = vld [vmem:[%s973] sm:$0xff]
    %v975 = vld [vmem:[%s973 + $0x8] sm:$0xff]
    %v976 = vld [vmem:[%s973 + $0x10] sm:$0xff]
    %v977 = vld [vmem:[%s973 + $0x18] sm:$0xff]
    %v978 = vld [vmem:[%s973 + $0x20] sm:$0xff]
    %v979 = vld [vmem:[%s973 + $0x28] sm:$0xff]
    %v980 = vld [vmem:[%s973 + $0x30] sm:$0xff]
    %v981 = vld [vmem:[%s973 + $0x38] sm:$0xff]
    %v982 = vld [vmem:[%s973 + $0x40] sm:$0xff]
    %v983 = vld [vmem:[%s973 + $0x48] sm:$0xff]
    %v984 = vld [vmem:[%s973 + $0x50] sm:$0xff]
    %v985 = vld [vmem:[%s973 + $0x58] sm:$0xff]
    %v986 = vld [vmem:[%s973 + $0x60] sm:$0xff]
    %v987 = vld [vmem:[%s973 + $0x68] sm:$0xff]
    %v988 = vld [vmem:[%s973 + $0x70] sm:$0xff]
    %v989 = vld [vmem:[%s973 + $0x78] sm:$0xff]
    %990 = vmatprep.subr.mxu0 0.0
    %991 = vmatpush1.msra.mxu0 %v989
    %992 = vmatprep.subr.mxu0 0.0
    %993 = vmatpush1.msra.mxu0 %v988
    %994 = vmatprep.subr.mxu0 0.0
    %995 = vmatpush1.msra.mxu0 %v987
    %996 = vmatprep.subr.mxu0 0.0
    %997 = vmatpush1.msra.mxu0 %v986
    %998 = vmatprep.subr.mxu0 0.0
    %999 = vmatpush1.msra.mxu0 %v985
    %1000 = vmatprep.subr.mxu0 0.0
    %1001 = vmatpush1.msra.mxu0 %v984
    %1002 = vmatprep.subr.mxu0 0.0
    %1003 = vmatpush1.msra.mxu0 %v983
    %1004 = vmatprep.subr.mxu0 0.0
    %1005 = vmatpush1.msra.mxu0 %v982
    %1006 = vmatprep.subr.mxu0 0.0
    %1007 = vmatpush1.msra.mxu0 %v981
    %1008 = vmatprep.subr.mxu0 0.0
    %1009 = vmatpush1.msra.mxu0 %v980
    %1010 = vmatprep.subr.mxu0 0.0
    %1011 = vmatpush1.msra.mxu0 %v979
    %1012 = vmatprep.subr.mxu0 0.0
    %1013 = vmatpush1.msra.mxu0 %v978
    %1014 = vmatprep.subr.mxu0 0.0
    %1015 = vmatpush1.msra.mxu0 %v977
    %1016 = vmatprep.subr.mxu0 0.0
    %1017 = vmatpush1.msra.mxu0 %v976
    %1018 = vmatprep.subr.mxu0 0.0
    %1019 = vmatpush1.msra.mxu0 %v975
    %1020 = vmatprep.subr.mxu0 0.0
    %1021 = vmatpush1.msra.mxu0 %v974
    %1022 = vmatprep.subr.mxu0 0.0
    %1023 = vmatpush2.msra.mxu0 0.0
    %1024 = vmatprep.subr.mxu0 0.0
    %1025 = vmatpush2.msra.mxu0 0.0
    %1026 = vmatprep.subr.mxu0 0.0
    %1027 = vmatpush2.msra.mxu0 0.0
    %1028 = vmatprep.subr.mxu0 0.0
    %1029 = vmatpush2.msra.mxu0 0.0
    %1030 = vmatprep.subr.mxu0 0.0
    %1031 = vmatpush2.msra.mxu0 0.0
    %1032 = vmatprep.subr.mxu0 0.0
    %1033 = vmatpush2.msra.mxu0 0.0
    %1034 = vmatprep.subr.mxu0 0.0
    %1035 = vmatpush2.msra.mxu0 0.0
    %1036 = vmatprep.subr.mxu0 0.0
    %1037 = vmatpush2.msra.mxu0 0.0
    %1038 = vmatprep.subr.mxu0 0.0
    %1039 = vmatpush2.msra.mxu0 0.0
    %1040 = vmatprep.subr.mxu0 0.0
    %1041 = vmatpush2.msra.mxu0 0.0
    %1042 = vmatprep.subr.mxu0 0.0
    %1043 = vmatpush2.msra.mxu0 0.0
    %1044 = vmatprep.subr.mxu0 0.0
    %1045 = vmatpush2.msra.mxu0 0.0
    %1046 = vmatprep.subr.mxu0 0.0
    %1047 = vmatpush2.msra.mxu0 0.0
    %1048 = vmatprep.subr.mxu0 0.0
    %1049 = vmatpush2.msra.mxu0 0.0
    %1050 = vmatprep.subr.mxu0 0.0
    %1051 = vmatpush2.msra.mxu0 0.0
    %1052 = vmatprep.subr.mxu0 0.0
    %1053 = vmatpush2.msra.mxu0 0.0
    %1054 = vmatprep.mubr.f32.mxu0 0.0
    %1055 = vmatmul.mubr.f32.gmra.mxu0 %v971
    %v1056 = vpop.f32.mrf.mxu0
    %v1057 = vadd.f32 0.0, %v1056
    %v1058 = vpop.f32.mrf.mxu0
    %1059 = vmatprep.mubr.f32.mxu0 0.0
    %1060 = vmatmul.mubr.f32.gmra.mxu0 %v972
    %v1061 = vpop.f32.mrf.mxu0
    %v1062 = vadd.f32 0.0, %v1061
    %v1063 = vpop.f32.mrf.mxu0
    %1064 = vdwg.mxu0
    %v1065 = vadd.f32 %v963, %v1057
    %v1066 = vadd.f32 %v968, %v1062
    %v1067 = vld [vmem:[%s6] sm:$0x1]
    %v1069 = vlaneseq
    %v1070 = vshrl.u32 %v1069, 7
    %v1071 = vsub.s32 0, %v1070
    %v1072 = vrot.slane %v1067, %v1071
    %v1074 = vadd.f32 %v1065, %v1072
    %v1075 = vadd.f32 %v1066, %v1072
    %v1076 = vmax.f32 %v1074, 0.0
    %v1077 = vmax.f32 %v1075, 0.0
    %1078 = vst [vmem:[#allocation4] sm:$0x1] 0.0
    %1079 = vst [vmem:[#allocation4 + $0x10] sm:$0x1] 0.0
    %1080 = vst [vmem:[#allocation4 + $0x9] sm:$0x1] 0.0
    %1081 = vst [vmem:[#allocation4 + $0x19] sm:$0x1] 0.0
    %1082 = vst [vmem:[#allocation4 + $0x1] sm:$0xff] %v1076
    %1083 = vst [vmem:[#allocation4 + $0x11] sm:$0xff] %v1077
    %v1084 = vld [vmem:[#allocation4] sm:$0xff]
    %v1085 = vld [vmem:[#allocation4 + $0x10] sm:$0xff]
    %v1086 = vld [vmem:[#allocation7] sm:$0xff]
    %v1087 = vld [vmem:[#allocation7 + $0x8] sm:$0xff]
    %v1088 = vld [vmem:[#allocation7 + $0x10] sm:$0xff]
    %v1089 = vld [vmem:[#allocation7 + $0x18] sm:$0xff]
    %v1090 = vld [vmem:[#allocation7 + $0x20] sm:$0xff]
    %v1091 = vld [vmem:[#allocation7 + $0x28] sm:$0xff]
    %v1092 = vld [vmem:[#allocation7 + $0x30] sm:$0xff]
    %v1093 = vld [vmem:[#allocation7 + $0x38] sm:$0xff]
    %v1094 = vld [vmem:[#allocation7 + $0x40] sm:$0xff]
    %v1095 = vld [vmem:[#allocation7 + $0x48] sm:$0xff]
    %v1096 = vld [vmem:[#allocation7 + $0x50] sm:$0xff]
    %v1097 = vld [vmem:[#allocation7 + $0x58] sm:$0xff]
    %v1098 = vld [vmem:[#allocation7 + $0x60] sm:$0xff]
    %v1099 = vld [vmem:[#allocation7 + $0x68] sm:$0xff]
    %v1100 = vld [vmem:[#allocation7 + $0x70] sm:$0xff]
    %v1101 = vld [vmem:[#allocation7 + $0x78] sm:$0xff]
    %v1102 = vld [vmem:[#allocation4 + $0x1] sm:$0xff]
    %v1103 = vld [vmem:[#allocation4 + $0x11] sm:$0xff]
    %s1104 = scalar_lea.vmem [#allocation7], 128
    %v1105 = vld [vmem:[%s1104] sm:$0xff]
    %v1106 = vld [vmem:[%s1104 + $0x8] sm:$0xff]
    %v1107 = vld [vmem:[%s1104 + $0x10] sm:$0xff]
    %v1108 = vld [vmem:[%s1104 + $0x18] sm:$0xff]
    %v1109 = vld [vmem:[%s1104 + $0x20] sm:$0xff]
    %v1110 = vld [vmem:[%s1104 + $0x28] sm:$0xff]
    %v1111 = vld [vmem:[%s1104 + $0x30] sm:$0xff]
    %v1112 = vld [vmem:[%s1104 + $0x38] sm:$0xff]
    %v1113 = vld [vmem:[%s1104 + $0x40] sm:$0xff]
    %v1114 = vld [vmem:[%s1104 + $0x48] sm:$0xff]
    %v1115 = vld [vmem:[%s1104 + $0x50] sm:$0xff]
    %v1116 = vld [vmem:[%s1104 + $0x58] sm:$0xff]
    %v1117 = vld [vmem:[%s1104 + $0x60] sm:$0xff]
    %v1118 = vld [vmem:[%s1104 + $0x68] sm:$0xff]
    %v1119 = vld [vmem:[%s1104 + $0x70] sm:$0xff]
    %v1120 = vld [vmem:[%s1104 + $0x78] sm:$0xff]
    %1121 = vmatprep.subr.mxu0 0.0
    %1122 = vmatpush1.msra.mxu0 %v1120
    %1123 = vmatprep.subr.mxu0 0.0
    %1124 = vmatpush1.msra.mxu0 %v1119
    %1125 = vmatprep.subr.mxu0 0.0
    %1126 = vmatpush1.msra.mxu0 %v1118
    %1127 = vmatprep.subr.mxu0 0.0
    %1128 = vmatpush1.msra.mxu0 %v1117
    %1129 = vmatprep.subr.mxu0 0.0
    %1130 = vmatpush1.msra.mxu0 %v1116
    %1131 = vmatprep.subr.mxu0 0.0
    %1132 = vmatpush1.msra.mxu0 %v1115
    %1133 = vmatprep.subr.mxu0 0.0
    %1134 = vmatpush1.msra.mxu0 %v1114
    %1135 = vmatprep.subr.mxu0 0.0
    %1136 = vmatpush1.msra.mxu0 %v1113
    %1137 = vmatprep.subr.mxu0 0.0
    %1138 = vmatpush1.msra.mxu0 %v1112
    %1139 = vmatprep.subr.mxu0 0.0
    %1140 = vmatpush1.msra.mxu0 %v1111
    %1141 = vmatprep.subr.mxu0 0.0
    %1142 = vmatpush1.msra.mxu0 %v1110
    %1143 = vmatprep.subr.mxu0 0.0
    %1144 = vmatpush1.msra.mxu0 %v1109
    %1145 = vmatprep.subr.mxu0 0.0
    %1146 = vmatpush1.msra.mxu0 %v1108
    %1147 = vmatprep.subr.mxu0 0.0
    %1148 = vmatpush1.msra.mxu0 %v1107
    %1149 = vmatprep.subr.mxu0 0.0
    %1150 = vmatpush1.msra.mxu0 %v1106
    %1151 = vmatprep.subr.mxu0 0.0
    %1152 = vmatpush1.msra.mxu0 %v1105
    %1153 = vmatprep.subr.mxu0 0.0
    %1154 = vmatpush2.msra.mxu0 0.0
    %1155 = vmatprep.subr.mxu0 0.0
    %1156 = vmatpush2.msra.mxu0 0.0
    %1157 = vmatprep.subr.mxu0 0.0
    %1158 = vmatpush2.msra.mxu0 0.0
    %1159 = vmatprep.subr.mxu0 0.0
    %1160 = vmatpush2.msra.mxu0 0.0
    %1161 = vmatprep.subr.mxu0 0.0
    %1162 = vmatpush2.msra.mxu0 0.0
    %1163 = vmatprep.subr.mxu0 0.0
    %1164 = vmatpush2.msra.mxu0 0.0
    %1165 = vmatprep.subr.mxu0 0.0
    %1166 = vmatpush2.msra.mxu0 0.0
    %1167 = vmatprep.subr.mxu0 0.0
    %1168 = vmatpush2.msra.mxu0 0.0
    %1169 = vmatprep.subr.mxu0 0.0
    %1170 = vmatpush2.msra.mxu0 0.0
    %1171 = vmatprep.subr.mxu0 0.0
    %1172 = vmatpush2.msra.mxu0 0.0
    %1173 = vmatprep.subr.mxu0 0.0
    %1174 = vmatpush2.msra.mxu0 0.0
    %1175 = vmatprep.subr.mxu0 0.0
    %1176 = vmatpush2.msra.mxu0 0.0
    %1177 = vmatprep.subr.mxu0 0.0
    %1178 = vmatpush2.msra.mxu0 0.0
    %1179 = vmatprep.subr.mxu0 0.0
    %1180 = vmatpush2.msra.mxu0 0.0
    %1181 = vmatprep.subr.mxu0 0.0
    %1182 = vmatpush2.msra.mxu0 0.0
    %1183 = vmatprep.subr.mxu0 0.0
    %1184 = vmatpush2.msra.mxu0 0.0
    %1185 = vmatprep.mubr.f32.mxu0 0.0
    %1186 = vmatmul.mubr.f32.gmra.mxu0 %v1102
    %v1187 = vpop.f32.mrf.mxu0
    %v1188 = vadd.f32 0.0, %v1187
    %v1189 = vpop.f32.mrf.mxu0
    %1190 = vmatprep.mubr.f32.mxu0 0.0
    %1191 = vmatmul.mubr.f32.gmra.mxu0 %v1103
    %v1192 = vpop.f32.mrf.mxu0
    %v1193 = vadd.f32 0.0, %v1192
    %v1194 = vpop.f32.mrf.mxu0
    %1195 = vdwg.mxu0
    %1196 = vmatprep.subr.mxu0 0.0
    %1197 = vmatpush1.msra.mxu0 %v1101
    %1198 = vmatprep.subr.mxu0 0.0
    %1199 = vmatpush1.msra.mxu0 %v1100
    %1200 = vmatprep.subr.mxu0 0.0
    %1201 = vmatpush1.msra.mxu0 %v1099
    %1202 = vmatprep.subr.mxu0 0.0
    %1203 = vmatpush1.msra.mxu0 %v1098
    %1204 = vmatprep.subr.mxu0 0.0
    %1205 = vmatpush1.msra.mxu0 %v1097
    %1206 = vmatprep.subr.mxu0 0.0
    %1207 = vmatpush1.msra.mxu0 %v1096
    %1208 = vmatprep.subr.mxu0 0.0
    %1209 = vmatpush1.msra.mxu0 %v1095
    %1210 = vmatprep.subr.mxu0 0.0
    %1211 = vmatpush1.msra.mxu0 %v1094
    %1212 = vmatprep.subr.mxu0 0.0
    %1213 = vmatpush1.msra.mxu0 %v1093
    %1214 = vmatprep.subr.mxu0 0.0
    %1215 = vmatpush1.msra.mxu0 %v1092
    %1216 = vmatprep.subr.mxu0 0.0
    %1217 = vmatpush1.msra.mxu0 %v1091
    %1218 = vmatprep.subr.mxu0 0.0
    %1219 = vmatpush1.msra.mxu0 %v1090
    %1220 = vmatprep.subr.mxu0 0.0
    %1221 = vmatpush1.msra.mxu0 %v1089
    %1222 = vmatprep.subr.mxu0 0.0
    %1223 = vmatpush1.msra.mxu0 %v1088
    %1224 = vmatprep.subr.mxu0 0.0
    %1225 = vmatpush1.msra.mxu0 %v1087
    %1226 = vmatprep.subr.mxu0 0.0
    %1227 = vmatpush1.msra.mxu0 %v1086
    %1228 = vmatprep.subr.mxu0 0.0
    %1229 = vmatpush2.msra.mxu0 0.0
    %1230 = vmatprep.subr.mxu0 0.0
    %1231 = vmatpush2.msra.mxu0 0.0
    %1232 = vmatprep.subr.mxu0 0.0
    %1233 = vmatpush2.msra.mxu0 0.0
    %1234 = vmatprep.subr.mxu0 0.0
    %1235 = vmatpush2.msra.mxu0 0.0
    %1236 = vmatprep.subr.mxu0 0.0
    %1237 = vmatpush2.msra.mxu0 0.0
    %1238 = vmatprep.subr.mxu0 0.0
    %1239 = vmatpush2.msra.mxu0 0.0
    %1240 = vmatprep.subr.mxu0 0.0
    %1241 = vmatpush2.msra.mxu0 0.0
    %1242 = vmatprep.subr.mxu0 0.0
    %1243 = vmatpush2.msra.mxu0 0.0
    %1244 = vmatprep.subr.mxu0 0.0
    %1245 = vmatpush2.msra.mxu0 0.0
    %1246 = vmatprep.subr.mxu0 0.0
    %1247 = vmatpush2.msra.mxu0 0.0
    %1248 = vmatprep.subr.mxu0 0.0
    %1249 = vmatpush2.msra.mxu0 0.0
    %1250 = vmatprep.subr.mxu0 0.0
    %1251 = vmatpush2.msra.mxu0 0.0
    %1252 = vmatprep.subr.mxu0 0.0
    %1253 = vmatpush2.msra.mxu0 0.0
    %1254 = vmatprep.subr.mxu0 0.0
    %1255 = vmatpush2.msra.mxu0 0.0
    %1256 = vmatprep.subr.mxu0 0.0
    %1257 = vmatpush2.msra.mxu0 0.0
    %1258 = vmatprep.subr.mxu0 0.0
    %1259 = vmatpush2.msra.mxu0 0.0
    %1260 = vmatprep.mubr.f32.mxu0 0.0
    %1261 = vmatmul.mubr.f32.gmra.mxu0 %v1084
    %v1262 = vpop.f32.mrf.mxu0
    %v1263 = vadd.f32 %v1188, %v1262
    %v1264 = vpop.f32.mrf.mxu0
    %1265 = vmatprep.mubr.f32.mxu0 0.0
    %1266 = vmatmul.mubr.f32.gmra.mxu0 %v1085
    %v1267 = vpop.f32.mrf.mxu0
    %v1268 = vadd.f32 %v1193, %v1267
    %v1269 = vpop.f32.mrf.mxu0
    %1270 = vdwg.mxu0
    %v1271 = vld [vmem:[#allocation4 + $0x2] sm:$0xff]
    %v1272 = vld [vmem:[#allocation4 + $0x12] sm:$0xff]
    %s1273 = scalar_lea.vmem [#allocation7], 256
    %v1274 = vld [vmem:[%s1273] sm:$0xff]
    %v1275 = vld [vmem:[%s1273 + $0x8] sm:$0xff]
    %v1276 = vld [vmem:[%s1273 + $0x10] sm:$0xff]
    %v1277 = vld [vmem:[%s1273 + $0x18] sm:$0xff]
    %v1278 = vld [vmem:[%s1273 + $0x20] sm:$0xff]
    %v1279 = vld [vmem:[%s1273 + $0x28] sm:$0xff]
    %v1280 = vld [vmem:[%s1273 + $0x30] sm:$0xff]
    %v1281 = vld [vmem:[%s1273 + $0x38] sm:$0xff]
    %v1282 = vld [vmem:[%s1273 + $0x40] sm:$0xff]
    %v1283 = vld [vmem:[%s1273 + $0x48] sm:$0xff]
    %v1284 = vld [vmem:[%s1273 + $0x50] sm:$0xff]
    %v1285 = vld [vmem:[%s1273 + $0x58] sm:$0xff]
    %v1286 = vld [vmem:[%s1273 + $0x60] sm:$0xff]
    %v1287 = vld [vmem:[%s1273 + $0x68] sm:$0xff]
    %v1288 = vld [vmem:[%s1273 + $0x70] sm:$0xff]
    %v1289 = vld [vmem:[%s1273 + $0x78] sm:$0xff]
    %1290 = vmatprep.subr.mxu0 0.0
    %1291 = vmatpush1.msra.mxu0 %v1289
    %1292 = vmatprep.subr.mxu0 0.0
    %1293 = vmatpush1.msra.mxu0 %v1288
    %1294 = vmatprep.subr.mxu0 0.0
    %1295 = vmatpush1.msra.mxu0 %v1287
    %1296 = vmatprep.subr.mxu0 0.0
    %1297 = vmatpush1.msra.mxu0 %v1286
    %1298 = vmatprep.subr.mxu0 0.0
    %1299 = vmatpush1.msra.mxu0 %v1285
    %1300 = vmatprep.subr.mxu0 0.0
    %1301 = vmatpush1.msra.mxu0 %v1284
    %1302 = vmatprep.subr.mxu0 0.0
    %1303 = vmatpush1.msra.mxu0 %v1283
    %1304 = vmatprep.subr.mxu0 0.0
    %1305 = vmatpush1.msra.mxu0 %v1282
    %1306 = vmatprep.subr.mxu0 0.0
    %1307 = vmatpush1.msra.mxu0 %v1281
    %1308 = vmatprep.subr.mxu0 0.0
    %1309 = vmatpush1.msra.mxu0 %v1280
    %1310 = vmatprep.subr.mxu0 0.0
    %1311 = vmatpush1.msra.mxu0 %v1279
    %1312 = vmatprep.subr.mxu0 0.0
    %1313 = vmatpush1.msra.mxu0 %v1278
    %1314 = vmatprep.subr.mxu0 0.0
    %1315 = vmatpush1.msra.mxu0 %v1277
    %1316 = vmatprep.subr.mxu0 0.0
    %1317 = vmatpush1.msra.mxu0 %v1276
    %1318 = vmatprep.subr.mxu0 0.0
    %1319 = vmatpush1.msra.mxu0 %v1275
    %1320 = vmatprep.subr.mxu0 0.0
    %1321 = vmatpush1.msra.mxu0 %v1274
    %1322 = vmatprep.subr.mxu0 0.0
    %1323 = vmatpush2.msra.mxu0 0.0
    %1324 = vmatprep.subr.mxu0 0.0
    %1325 = vmatpush2.msra.mxu0 0.0
    %1326 = vmatprep.subr.mxu0 0.0
    %1327 = vmatpush2.msra.mxu0 0.0
    %1328 = vmatprep.subr.mxu0 0.0
    %1329 = vmatpush2.msra.mxu0 0.0
    %1330 = vmatprep.subr.mxu0 0.0
    %1331 = vmatpush2.msra.mxu0 0.0
    %1332 = vmatprep.subr.mxu0 0.0
    %1333 = vmatpush2.msra.mxu0 0.0
    %1334 = vmatprep.subr.mxu0 0.0
    %1335 = vmatpush2.msra.mxu0 0.0
    %1336 = vmatprep.subr.mxu0 0.0
    %1337 = vmatpush2.msra.mxu0 0.0
    %1338 = vmatprep.subr.mxu0 0.0
    %1339 = vmatpush2.msra.mxu0 0.0
    %1340 = vmatprep.subr.mxu0 0.0
    %1341 = vmatpush2.msra.mxu0 0.0
    %1342 = vmatprep.subr.mxu0 0.0
    %1343 = vmatpush2.msra.mxu0 0.0
    %1344 = vmatprep.subr.mxu0 0.0
    %1345 = vmatpush2.msra.mxu0 0.0
    %1346 = vmatprep.subr.mxu0 0.0
    %1347 = vmatpush2.msra.mxu0 0.0
    %1348 = vmatprep.subr.mxu0 0.0
    %1349 = vmatpush2.msra.mxu0 0.0
    %1350 = vmatprep.subr.mxu0 0.0
    %1351 = vmatpush2.msra.mxu0 0.0
    %1352 = vmatprep.subr.mxu0 0.0
    %1353 = vmatpush2.msra.mxu0 0.0
    %1354 = vmatprep.mubr.f32.mxu0 0.0
    %1355 = vmatmul.mubr.f32.gmra.mxu0 %v1271
    %v1356 = vpop.f32.mrf.mxu0
    %v1357 = vadd.f32 0.0, %v1356
    %v1358 = vpop.f32.mrf.mxu0
    %1359 = vmatprep.mubr.f32.mxu0 0.0
    %1360 = vmatmul.mubr.f32.gmra.mxu0 %v1272
    %v1361 = vpop.f32.mrf.mxu0
    %v1362 = vadd.f32 0.0, %v1361
    %v1363 = vpop.f32.mrf.mxu0
    %1364 = vdwg.mxu0
    %v1365 = vadd.f32 %v1263, %v1357
    %v1366 = vadd.f32 %v1268, %v1362
    %v1367 = vld [vmem:[%s8] sm:$0x1]
    %v1369 = vlaneseq
    %v1370 = vshrl.u32 %v1369, 7
    %v1371 = vsub.s32 0, %v1370
    %v1372 = vrot.slane %v1367, %v1371
    %v1374 = vadd.f32 %v1365, %v1372
    %v1375 = vadd.f32 %v1366, %v1372
    %v1376 = vmax.f32 %v1374, 0.0
    %v1377 = vmax.f32 %v1375, 0.0
    %1378 = vst [vmem:[#allocation6] sm:$0xff] %v1376
    %1379 = vst [vmem:[#allocation6 + $0x8] sm:$0xff] %v1377
    %v1380 = vld [vmem:[#allocation6] ss:$2 sm:$0xff]
    %s1381 = scalar_lea.vmem [#allocation6], 1
    %v1382 = vld [vmem:[%s1381] ss:$2 sm:$0xff]
    %v1383 = vmax.f32 %v1380, %v1382
    %1385 = vrot.lane.b32.xlu0 %v1383, 112
    %v1386 = vpop.permute.xlu0 %1385
    %vm1388 = vcmask 916480
    %v1389 = vsel %vm1388, %v1386, 0.0
    %v1390 = vmax.f32 %v1383, %v1389
    %v1392 = vcombine.high %v1390, %v1390
    %v1393 = vlaneseq
    %v1394 = vshrl.u32 %v1393, 7
    %v1395 = vsub.s32 0, %v1394
    %v1396 = vrot.slane %v1390, %v1395
    %v1397 = vlaneseq
    %v1398 = vshrl.u32 %v1397, 7
    %v1399 = vsub.s32 0, %v1398
    %v1400 = vrot.slane %v1392, %v1399
    %vm1401 = vcmask 1041409
    %v1402 = vsel %vm1401, %v1400, %v1396
    %v1404 = vlaneseq
    %v1405 = vshrl.u32 %v1404, 7
    %v1406 = vsub.s32 1, %v1405
    %v1407 = vrot.slane %v1390, %v1406
    %v1408 = vlaneseq
    %v1409 = vshrl.u32 %v1408, 7
    %v1410 = vsub.s32 1, %v1409
    %v1411 = vrot.slane %v1392, %v1410
    %v1412 = vsel %vm1401, %v1411, %v1407
    %v1414 = vlaneseq
    %v1415 = vshrl.u32 %v1414, 7
    %v1416 = vsub.s32 2, %v1415
    %v1417 = vrot.slane %v1390, %v1416
    %v1418 = vlaneseq
    %v1419 = vshrl.u32 %v1418, 7
    %v1420 = vsub.s32 2, %v1419
    %v1421 = vrot.slane %v1392, %v1420
    %v1422 = vsel %vm1401, %v1421, %v1417
    %v1424 = vlaneseq
    %v1425 = vshrl.u32 %v1424, 7
    %v1426 = vsub.s32 3, %v1425
    %v1427 = vrot.slane %v1390, %v1426
    %v1428 = vlaneseq
    %v1429 = vshrl.u32 %v1428, 7
    %v1430 = vsub.s32 3, %v1429
    %v1431 = vrot.slane %v1392, %v1430
    %v1432 = vsel %vm1401, %v1431, %v1427
    %v1434 = vld [vmem:[%s9] sm:$0xff]
    %v1435 = vld [vmem:[%s9 + $0x8] sm:$0xff]
    %v1436 = vld [vmem:[%s9 + $0x10] sm:$0xff]
    %v1437 = vld [vmem:[%s9 + $0x18] sm:$0xff]
    %v1438 = vld [vmem:[%s9 + $0x20] sm:$0xff]
    %v1439 = vld [vmem:[%s9 + $0x28] sm:$0xff]
    %v1440 = vld [vmem:[%s9 + $0x30] sm:$0xff]
    %v1441 = vld [vmem:[%s9 + $0x38] sm:$0xff]
    %v1442 = vld [vmem:[%s9 + $0x40] sm:$0xff]
    %v1443 = vld [vmem:[%s9 + $0x48] sm:$0xff]
    %v1444 = vld [vmem:[%s9 + $0x50] sm:$0xff]
    %v1445 = vld [vmem:[%s9 + $0x58] sm:$0xff]
    %v1446 = vld [vmem:[%s9 + $0x60] sm:$0xff]
    %v1447 = vld [vmem:[%s9 + $0x68] sm:$0xff]
    %v1448 = vld [vmem:[%s9 + $0x70] sm:$0xff]
    %v1449 = vld [vmem:[%s9 + $0x78] sm:$0xff]
    %v1450 = vld [vmem:[%s9 + $0x80] sm:$0xff]
    %v1451 = vld [vmem:[%s9 + $0x88] sm:$0xff]
    %v1452 = vld [vmem:[%s9 + $0x90] sm:$0xff]
    %v1453 = vld [vmem:[%s9 + $0x98] sm:$0xff]
    %v1454 = vld [vmem:[%s9 + $0xa0] sm:$0xff]
    %v1455 = vld [vmem:[%s9 + $0xa8] sm:$0xff]
    %v1456 = vld [vmem:[%s9 + $0xb0] sm:$0xff]
    %v1457 = vld [vmem:[%s9 + $0xb8] sm:$0xff]
    %v1458 = vld [vmem:[%s9 + $0xc0] sm:$0xff]
    %v1459 = vld [vmem:[%s9 + $0xc8] sm:$0xff]
    %v1460 = vld [vmem:[%s9 + $0xd0] sm:$0xff]
    %v1461 = vld [vmem:[%s9 + $0xd8] sm:$0xff]
    %v1462 = vld [vmem:[%s9 + $0xe0] sm:$0xff]
    %v1463 = vld [vmem:[%s9 + $0xe8] sm:$0xff]
    %v1464 = vld [vmem:[%s9 + $0xf0] sm:$0xff]
    %v1465 = vld [vmem:[%s9 + $0xf8] sm:$0xff]
    %v1466 = vld [vmem:[%s9 + $0x100] sm:$0xff]
    %v1467 = vld [vmem:[%s9 + $0x108] sm:$0xff]
    %v1468 = vld [vmem:[%s9 + $0x110] sm:$0xff]
    %v1469 = vld [vmem:[%s9 + $0x118] sm:$0xff]
    %v1470 = vld [vmem:[%s9 + $0x120] sm:$0xff]
    %v1471 = vld [vmem:[%s9 + $0x128] sm:$0xff]
    %v1472 = vld [vmem:[%s9 + $0x130] sm:$0xff]
    %v1473 = vld [vmem:[%s9 + $0x138] sm:$0xff]
    %v1474 = vld [vmem:[%s9 + $0x140] sm:$0xff]
    %v1475 = vld [vmem:[%s9 + $0x148] sm:$0xff]
    %v1476 = vld [vmem:[%s9 + $0x150] sm:$0xff]
    %v1477 = vld [vmem:[%s9 + $0x158] sm:$0xff]
    %v1478 = vld [vmem:[%s9 + $0x160] sm:$0xff]
    %v1479 = vld [vmem:[%s9 + $0x168] sm:$0xff]
    %v1480 = vld [vmem:[%s9 + $0x170] sm:$0xff]
    %v1481 = vld [vmem:[%s9 + $0x178] sm:$0xff]
    %v1482 = vld [vmem:[%s9 + $0x180] sm:$0xff]
    %v1483 = vld [vmem:[%s9 + $0x188] sm:$0xff]
    %v1484 = vld [vmem:[%s9 + $0x190] sm:$0xff]
    %v1485 = vld [vmem:[%s9 + $0x198] sm:$0xff]
    %v1486 = vld [vmem:[%s9 + $0x1a0] sm:$0xff]
    %v1487 = vld [vmem:[%s9 + $0x1a8] sm:$0xff]
    %v1488 = vld [vmem:[%s9 + $0x1b0] sm:$0xff]
    %v1489 = vld [vmem:[%s9 + $0x1b8] sm:$0xff]
    %v1490 = vld [vmem:[%s9 + $0x1c0] sm:$0xff]
    %v1491 = vld [vmem:[%s9 + $0x1c8] sm:$0xff]
    %v1492 = vld [vmem:[%s9 + $0x1d0] sm:$0xff]
    %v1493 = vld [vmem:[%s9 + $0x1d8] sm:$0xff]
    %v1494 = vld [vmem:[%s9 + $0x1e0] sm:$0xff]
    %v1495 = vld [vmem:[%s9 + $0x1e8] sm:$0xff]
    %v1496 = vld [vmem:[%s9 + $0x1f0] sm:$0xff]
    %v1497 = vld [vmem:[%s9 + $0x1f8] sm:$0xff]
    %v1498 = vld [vmem:[%s10] sm:$0x1]
    %v1500 = vlaneseq
    %v1501 = vshrl.u32 %v1500, 7
    %v1502 = vsub.s32 0, %v1501
    %v1503 = vrot.slane %v1498, %v1502
    %1505 = vmatprep.subr.mxu0 0.0
    %1506 = vmatpush1.msra.mxu0 %v1449
    %1507 = vmatprep.subr.mxu0 0.0
    %1508 = vmatpush1.msra.mxu0 %v1448
    %1509 = vmatprep.subr.mxu0 0.0
    %1510 = vmatpush1.msra.mxu0 %v1447
    %1511 = vmatprep.subr.mxu0 0.0
    %1512 = vmatpush1.msra.mxu0 %v1446
    %1513 = vmatprep.subr.mxu0 0.0
    %1514 = vmatpush1.msra.mxu0 %v1445
    %1515 = vmatprep.subr.mxu0 0.0
    %1516 = vmatpush1.msra.mxu0 %v1444
    %1517 = vmatprep.subr.mxu0 0.0
    %1518 = vmatpush1.msra.mxu0 %v1443
    %1519 = vmatprep.subr.mxu0 0.0
    %1520 = vmatpush1.msra.mxu0 %v1442
    %1521 = vmatprep.subr.mxu0 0.0
    %1522 = vmatpush1.msra.mxu0 %v1441
    %1523 = vmatprep.subr.mxu0 0.0
    %1524 = vmatpush1.msra.mxu0 %v1440
    %1525 = vmatprep.subr.mxu0 0.0
    %1526 = vmatpush1.msra.mxu0 %v1439
    %1527 = vmatprep.subr.mxu0 0.0
    %1528 = vmatpush1.msra.mxu0 %v1438
    %1529 = vmatprep.subr.mxu0 0.0
    %1530 = vmatpush1.msra.mxu0 %v1437
    %1531 = vmatprep.subr.mxu0 0.0
    %1532 = vmatpush1.msra.mxu0 %v1436
    %1533 = vmatprep.subr.mxu0 0.0
    %1534 = vmatpush1.msra.mxu0 %v1435
    %1535 = vmatprep.subr.mxu0 0.0
    %1536 = vmatpush1.msra.mxu0 %v1434
    %1537 = vmatprep.subr.mxu0 0.0
    %1538 = vmatpush2.msra.mxu0 %v1465
    %1539 = vmatprep.subr.mxu0 0.0
    %1540 = vmatpush2.msra.mxu0 %v1464
    %1541 = vmatprep.subr.mxu0 0.0
    %1542 = vmatpush2.msra.mxu0 %v1463
    %1543 = vmatprep.subr.mxu0 0.0
    %1544 = vmatpush2.msra.mxu0 %v1462
    %1545 = vmatprep.subr.mxu0 0.0
    %1546 = vmatpush2.msra.mxu0 %v1461
    %1547 = vmatprep.subr.mxu0 0.0
    %1548 = vmatpush2.msra.mxu0 %v1460
    %1549 = vmatprep.subr.mxu0 0.0
    %1550 = vmatpush2.msra.mxu0 %v1459
    %1551 = vmatprep.subr.mxu0 0.0
    %1552 = vmatpush2.msra.mxu0 %v1458
    %1553 = vmatprep.subr.mxu0 0.0
    %1554 = vmatpush2.msra.mxu0 %v1457
    %1555 = vmatprep.subr.mxu0 0.0
    %1556 = vmatpush2.msra.mxu0 %v1456
    %1557 = vmatprep.subr.mxu0 0.0
    %1558 = vmatpush2.msra.mxu0 %v1455
    %1559 = vmatprep.subr.mxu0 0.0
    %1560 = vmatpush2.msra.mxu0 %v1454
    %1561 = vmatprep.subr.mxu0 0.0
    %1562 = vmatpush2.msra.mxu0 %v1453
    %1563 = vmatprep.subr.mxu0 0.0
    %1564 = vmatpush2.msra.mxu0 %v1452
    %1565 = vmatprep.subr.mxu0 0.0
    %1566 = vmatpush2.msra.mxu0 %v1451
    %1567 = vmatprep.subr.mxu0 0.0
    %1568 = vmatpush2.msra.mxu0 %v1450
    %1569 = vmatprep.mubr.f32.mxu0 %v1412
    %1570 = vmatmul.mubr.f32.gmra.mxu0 %v1402
    %v1571 = vpop.f32.mrf.mxu0
    %v1572 = vadd.f32 %v1503, %v1571
    %v1573 = vpop.f32.mrf.mxu0
    %1574 = vdwg.mxu0
    %1575 = vmatprep.subr.mxu0 0.0
    %1576 = vmatpush1.msra.mxu0 %v1481
    %1577 = vmatprep.subr.mxu0 0.0
    %1578 = vmatpush1.msra.mxu0 %v1480
    %1579 = vmatprep.subr.mxu0 0.0
    %1580 = vmatpush1.msra.mxu0 %v1479
    %1581 = vmatprep.subr.mxu0 0.0
    %1582 = vmatpush1.msra.mxu0 %v1478
    %1583 = vmatprep.subr.mxu0 0.0
    %1584 = vmatpush1.msra.mxu0 %v1477
    %1585 = vmatprep.subr.mxu0 0.0
    %1586 = vmatpush1.msra.mxu0 %v1476
    %1587 = vmatprep.subr.mxu0 0.0
    %1588 = vmatpush1.msra.mxu0 %v1475
    %1589 = vmatprep.subr.mxu0 0.0
    %1590 = vmatpush1.msra.mxu0 %v1474
    %1591 = vmatprep.subr.mxu0 0.0
    %1592 = vmatpush1.msra.mxu0 %v1473
    %1593 = vmatprep.subr.mxu0 0.0
    %1594 = vmatpush1.msra.mxu0 %v1472
    %1595 = vmatprep.subr.mxu0 0.0
    %1596 = vmatpush1.msra.mxu0 %v1471
    %1597 = vmatprep.subr.mxu0 0.0
    %1598 = vmatpush1.msra.mxu0 %v1470
    %1599 = vmatprep.subr.mxu0 0.0
    %1600 = vmatpush1.msra.mxu0 %v1469
    %1601 = vmatprep.subr.mxu0 0.0
    %1602 = vmatpush1.msra.mxu0 %v1468
    %1603 = vmatprep.subr.mxu0 0.0
    %1604 = vmatpush1.msra.mxu0 %v1467
    %1605 = vmatprep.subr.mxu0 0.0
    %1606 = vmatpush1.msra.mxu0 %v1466
    %1607 = vmatprep.subr.mxu0 0.0
    %1608 = vmatpush2.msra.mxu0 %v1497
    %1609 = vmatprep.subr.mxu0 0.0
    %1610 = vmatpush2.msra.mxu0 %v1496
    %1611 = vmatprep.subr.mxu0 0.0
    %1612 = vmatpush2.msra.mxu0 %v1495
    %1613 = vmatprep.subr.mxu0 0.0
    %1614 = vmatpush2.msra.mxu0 %v1494
    %1615 = vmatprep.subr.mxu0 0.0
    %1616 = vmatpush2.msra.mxu0 %v1493
    %1617 = vmatprep.subr.mxu0 0.0
    %1618 = vmatpush2.msra.mxu0 %v1492
    %1619 = vmatprep.subr.mxu0 0.0
    %1620 = vmatpush2.msra.mxu0 %v1491
    %1621 = vmatprep.subr.mxu0 0.0
    %1622 = vmatpush2.msra.mxu0 %v1490
    %1623 = vmatprep.subr.mxu0 0.0
    %1624 = vmatpush2.msra.mxu0 %v1489
    %1625 = vmatprep.subr.mxu0 0.0
    %1626 = vmatpush2.msra.mxu0 %v1488
    %1627 = vmatprep.subr.mxu0 0.0
    %1628 = vmatpush2.msra.mxu0 %v1487
    %1629 = vmatprep.subr.mxu0 0.0
    %1630 = vmatpush2.msra.mxu0 %v1486
    %1631 = vmatprep.subr.mxu0 0.0
    %1632 = vmatpush2.msra.mxu0 %v1485
    %1633 = vmatprep.subr.mxu0 0.0
    %1634 = vmatpush2.msra.mxu0 %v1484
    %1635 = vmatprep.subr.mxu0 0.0
    %1636 = vmatpush2.msra.mxu0 %v1483
    %1637 = vmatprep.subr.mxu0 0.0
    %1638 = vmatpush2.msra.mxu0 %v1482
    %1639 = vmatprep.mubr.f32.mxu0 %v1432
    %1640 = vmatmul.mubr.f32.gmra.mxu0 %v1422
    %v1641 = vpop.f32.mrf.mxu0
    %v1642 = vadd.f32 %v1572, %v1641
    %v1643 = vpop.f32.mrf.mxu0
    %1644 = vdwg.mxu0
    %v1645 = vmax.f32 %v1642, 0.0
    %v1646 = vld [vmem:[%s11] sm:$0xff]
    %v1647 = vld [vmem:[%s11 + $0x8] sm:$0xff]
    %v1648 = vld [vmem:[%s11 + $0x10] sm:$0xff]
    %v1649 = vld [vmem:[%s11 + $0x18] sm:$0xff]
    %v1650 = vld [vmem:[%s12] sm:$0x1]
    %v1652 = vlaneseq
    %v1653 = vshrl.u32 %v1652, 7
    %v1654 = vsub.s32 0, %v1653
    %v1655 = vrot.slane %v1650, %v1654
    %vm1657 = vcmask 261120
    %v1659 = vsel %vm1657, %v1645, 0
    %1661 = vmatprep.subr.mxu0 0.0
    %1662 = vmatpush1.msra.mxu0 0.0
    %1663 = vmatprep.subr.mxu0 0.0
    %1664 = vmatpush1.msra.mxu0 0.0
    %1665 = vmatprep.subr.mxu0 0.0
    %1666 = vmatpush1.msra.mxu0 0.0
    %1667 = vmatprep.subr.mxu0 0.0
    %1668 = vmatpush1.msra.mxu0 0.0
    %1669 = vmatprep.subr.mxu0 0.0
    %1670 = vmatpush1.msra.mxu0 0.0
    %1671 = vmatprep.subr.mxu0 0.0
    %1672 = vmatpush1.msra.mxu0 0.0
    %1673 = vmatprep.subr.mxu0 0.0
    %1674 = vmatpush1.msra.mxu0 0.0
    %1675 = vmatprep.subr.mxu0 0.0
    %1676 = vmatpush1.msra.mxu0 0.0
    %1677 = vmatprep.subr.mxu0 0.0
    %1678 = vmatpush1.msra.mxu0 0.0
    %1679 = vmatprep.subr.mxu0 0.0
    %1680 = vmatpush1.msra.mxu0 0.0
    %1681 = vmatprep.subr.mxu0 0.0
    %1682 = vmatpush1.msra.mxu0 0.0
    %1683 = vmatprep.subr.mxu0 0.0
    %1684 = vmatpush1.msra.mxu0 0.0
    %1685 = vmatprep.subr.mxu0 0.0
    %1686 = vmatpush1.msra.mxu0 %v1649
    %1687 = vmatprep.subr.mxu0 0.0
    %1688 = vmatpush1.msra.mxu0 %v1648
    %1689 = vmatprep.subr.mxu0 0.0
    %1690 = vmatpush1.msra.mxu0 %v1647
    %1691 = vmatprep.subr.mxu0 0.0
    %1692 = vmatpush1.msra.mxu0 %v1646
    %1693 = vmatprep.subr.mxu0 0.0
    %1694 = vmatpush2.msra.mxu0 0.0
    %1695 = vmatprep.subr.mxu0 0.0
    %1696 = vmatpush2.msra.mxu0 0.0
    %1697 = vmatprep.subr.mxu0 0.0
    %1698 = vmatpush2.msra.mxu0 0.0
    %1699 = vmatprep.subr.mxu0 0.0
    %1700 = vmatpush2.msra.mxu0 0.0
    %1701 = vmatprep.subr.mxu0 0.0
    %1702 = vmatpush2.msra.mxu0 0.0
    %1703 = vmatprep.subr.mxu0 0.0
    %1704 = vmatpush2.msra.mxu0 0.0
    %1705 = vmatprep.subr.mxu0 0.0
    %1706 = vmatpush2.msra.mxu0 0.0
    %1707 = vmatprep.subr.mxu0 0.0
    %1708 = vmatpush2.msra.mxu0 0.0
    %1709 = vmatprep.subr.mxu0 0.0
    %1710 = vmatpush2.msra.mxu0 0.0
    %1711 = vmatprep.subr.mxu0 0.0
    %1712 = vmatpush2.msra.mxu0 0.0
    %1713 = vmatprep.subr.mxu0 0.0
    %1714 = vmatpush2.msra.mxu0 0.0
    %1715 = vmatprep.subr.mxu0 0.0
    %1716 = vmatpush2.msra.mxu0 0.0
    %1717 = vmatprep.subr.mxu0 0.0
    %1718 = vmatpush2.msra.mxu0 0.0
    %1719 = vmatprep.subr.mxu0 0.0
    %1720 = vmatpush2.msra.mxu0 0.0
    %1721 = vmatprep.subr.mxu0 0.0
    %1722 = vmatpush2.msra.mxu0 0.0
    %1723 = vmatprep.subr.mxu0 0.0
    %1724 = vmatpush2.msra.mxu0 0.0
    %1725 = vmatprep.mubr.f32.mxu0 0.0
    %1726 = vmatmul.mubr.f32.gmra.mxu0 %v1659
    %v1727 = vpop.f32.mrf.mxu0
    %v1728 = vadd.f32 %v1655, %v1727
    %v1729 = vpop.f32.mrf.mxu0
    %1730 = vdwg.mxu0
    %v1731 = vmax.f32 %v1728, 0.0
    %v1732 = vld [vmem:[%s13] sm:$0xff]
    %v1733 = vld [vmem:[%s13 + $0x8] sm:$0xff]
    %v1734 = vld [vmem:[%s13 + $0x10] sm:$0xff]
    %v1735 = vld [vmem:[%s13 + $0x18] sm:$0xff]
    %v1736 = vld [vmem:[%s14] sm:$0x1]
    %v1738 = vlaneseq
    %v1739 = vshrl.u32 %v1738, 7
    %v1740 = vsub.s32 0, %v1739
    %v1741 = vrot.slane %v1736, %v1740
    %v1744 = vsel %vm1657, %v1731, 0
    %1746 = vmatprep.subr.mxu0 0.0
    %1747 = vmatpush1.msra.mxu0 0.0
    %1748 = vmatprep.subr.mxu0 0.0
    %1749 = vmatpush1.msra.mxu0 0.0
    %1750 = vmatprep.subr.mxu0 0.0
    %1751 = vmatpush1.msra.mxu0 0.0
    %1752 = vmatprep.subr.mxu0 0.0
    %1753 = vmatpush1.msra.mxu0 0.0
    %1754 = vmatprep.subr.mxu0 0.0
    %1755 = vmatpush1.msra.mxu0 0.0
    %1756 = vmatprep.subr.mxu0 0.0
    %1757 = vmatpush1.msra.mxu0 0.0
    %1758 = vmatprep.subr.mxu0 0.0
    %1759 = vmatpush1.msra.mxu0 0.0
    %1760 = vmatprep.subr.mxu0 0.0
    %1761 = vmatpush1.msra.mxu0 0.0
    %1762 = vmatprep.subr.mxu0 0.0
    %1763 = vmatpush1.msra.mxu0 0.0
    %1764 = vmatprep.subr.mxu0 0.0
    %1765 = vmatpush1.msra.mxu0 0.0
    %1766 = vmatprep.subr.mxu0 0.0
    %1767 = vmatpush1.msra.mxu0 0.0
    %1768 = vmatprep.subr.mxu0 0.0
    %1769 = vmatpush1.msra.mxu0 0.0
    %1770 = vmatprep.subr.mxu0 0.0
    %1771 = vmatpush1.msra.mxu0 %v1735
    %1772 = vmatprep.subr.mxu0 0.0
    %1773 = vmatpush1.msra.mxu0 %v1734
    %1774 = vmatprep.subr.mxu0 0.0
    %1775 = vmatpush1.msra.mxu0 %v1733
    %1776 = vmatprep.subr.mxu0 0.0
    %1777 = vmatpush1.msra.mxu0 %v1732
    %1778 = vmatprep.subr.mxu0 0.0
    %1779 = vmatpush2.msra.mxu0 0.0
    %1780 = vmatprep.subr.mxu0 0.0
    %1781 = vmatpush2.msra.mxu0 0.0
    %1782 = vmatprep.subr.mxu0 0.0
    %1783 = vmatpush2.msra.mxu0 0.0
    %1784 = vmatprep.subr.mxu0 0.0
    %1785 = vmatpush2.msra.mxu0 0.0
    %1786 = vmatprep.subr.mxu0 0.0
    %1787 = vmatpush2.msra.mxu0 0.0
    %1788 = vmatprep.subr.mxu0 0.0
    %1789 = vmatpush2.msra.mxu0 0.0
    %1790 = vmatprep.subr.mxu0 0.0
    %1791 = vmatpush2.msra.mxu0 0.0
    %1792 = vmatprep.subr.mxu0 0.0
    %1793 = vmatpush2.msra.mxu0 0.0
    %1794 = vmatprep.subr.mxu0 0.0
    %1795 = vmatpush2.msra.mxu0 0.0
    %1796 = vmatprep.subr.mxu0 0.0
    %1797 = vmatpush2.msra.mxu0 0.0
    %1798 = vmatprep.subr.mxu0 0.0
    %1799 = vmatpush2.msra.mxu0 0.0
    %1800 = vmatprep.subr.mxu0 0.0
    %1801 = vmatpush2.msra.mxu0 0.0
    %1802 = vmatprep.subr.mxu0 0.0
    %1803 = vmatpush2.msra.mxu0 0.0
    %1804 = vmatprep.subr.mxu0 0.0
    %1805 = vmatpush2.msra.mxu0 0.0
    %1806 = vmatprep.subr.mxu0 0.0
    %1807 = vmatpush2.msra.mxu0 0.0
    %1808 = vmatprep.subr.mxu0 0.0
    %1809 = vmatpush2.msra.mxu0 0.0
    %1810 = vmatprep.mubr.f32.mxu0 0.0
    %1811 = vmatmul.mubr.f32.gmra.mxu0 %v1744
    %v1812 = vpop.f32.mrf.mxu0
    %v1813 = vadd.f32 %v1741, %v1812
    %v1814 = vpop.f32.mrf.mxu0
    %1815 = vdwg.mxu0
    %vm1816 = vcmask 58368
    %1817 = vst.msk [vmem:[#allocation10] sm:$0x3] %vm1816, %v1813
    // Predicated region
    $region66: #{cnn_b_forward.1} parent=1 // pred_check
      _
    $region67: #{cnn_b_forward.1} parent=1 // pred_check_branch
      %1819 = sbr.rel (0) target = $region69
    $region68: #{cnn_b_forward.1} parent=1 // pred_region
      %s1821 = ssub.s32 32, 32
      %1822 = vsyncadd [#allocation9], %s1821
      %s1824 = sshll.u32 [#allocation10], 4
      %s1825 = int_to_ptr.vmem [resolvable:$true] %s1824
      %1827 = dma.vmem_to_hbm [thread:$0]  %s1825, 32, %s15, [#allocation9]
    $region69: #{cnn_b_forward.1} parent=1 // pred_fallthru
      _
    // Predicated region
    $region70: #{cnn_b_forward.1} parent=1 // pred_check
      _
    $region71: #{cnn_b_forward.1} parent=1 // pred_check_branch
      %1829 = sbr.rel (0) target = $region73
    $region72: #{cnn_b_forward.1} parent=1 // pred_region
      %1830 = dma.done [#allocation9], 32
    $region73: #{cnn_b_forward.1} parent=1 // pred_fallthru
      _
    %1831 = vsyncpa [#allocation8], 1
    %1832 = vsyncpa [#allocation9], 1

</llo_original>
